<compile_context>
chip_gen: v7x
topology: tpu7x:2x2x1
jax: 0.10.0
libtpu: 0.0.40
codegen_flags: <defaults>
</compile_context>

<pallas_src>
import math
import functools

import jax
import jax.numpy as jnp
from jax.experimental import pallas as pl
from jax.experimental.pallas import tpu as pltpu


# ----------------------------- in-kernel math ------------------------------

def _gelu(x):
    # tanh-approx GELU: the transcendental runs on the EUP slot.
    # TODO(synk): PyTorch nn.GELU() default is exact erf; tanh approximation
    # differs by <1e-3 absolute but avoids a long VALU polynomial.
    c = 0.7978845608028654  # sqrt(2/pi)
    return 0.5 * x * (1.0 + jnp.tanh(c * (x + 0.044715 * x * x * x)))


def _layernorm(h, w, b, eps=1e-5):
    # h: (T, C) f32; w, b: (1, C) f32
    mu = jnp.mean(h, axis=-1, keepdims=True)
    var = jnp.mean((h - mu) ** 2, axis=-1, keepdims=True)
    return (h - mu) * jax.lax.rsqrt(var + eps) * w + b


# ----------------------------- Pallas kernels ------------------------------

def _blocks_kernel(x_ref, ln1w_ref, ln1b_ref, wqkv_ref, bqkv_ref, wo_ref,
                   bo_ref, ln2w_ref, ln2b_ref, w1_ref, b1_ref, w2_ref, b2_ref,
                   o_ref, x_sc, *, n_head):
    """All transformer blocks for one batch element.

    grid = (B, n_layer): weights are indexed by the layer axis, the residual
    stream is carried across layers in the f32 VMEM scratch `x_sc`.
    """
    layer = pl.program_id(1)

    @pl.when(layer == 0)
    def _():
        x_sc[...] = x_ref[0]                     # load residual stream (f32)

    x = x_sc[...]                                # (T, C) f32
    T, C = x.shape
    D = C // n_head
    scale = 1.0 / math.sqrt(D)

    # ---- causal self-attention (fused QKV, head-accumulated projection) ----
    xn = _layernorm(x, ln1w_ref[0], ln1b_ref[0]).astype(jnp.bfloat16)
    qkv = jnp.dot(xn, wqkv_ref[0], preferred_element_type=jnp.float32)
    qkv = (qkv + bqkv_ref[0]).astype(jnp.bfloat16)      # (T, 3C)

    row = jax.lax.broadcasted_iota(jnp.int32, (T, T), 0)
    col = jax.lax.broadcasted_iota(jnp.int32, (T, T), 1)
    causal = row >= col

    wo = wo_ref[0]                                       # (C, C) bf16
    acc = jnp.zeros((T, C), jnp.float32)
    for h in range(n_head):                              # short, unrolled
        qh = qkv[:, h * D:(h + 1) * D]
        kh = qkv[:, C + h * D:C + (h + 1) * D]
        vh = qkv[:, 2 * C + h * D:2 * C + (h + 1) * D]
        att = jax.lax.dot_general(
            qh, kh, (((1,), (1,)), ((), ())),
            preferred_element_type=jnp.float32) * scale   # (T, T) f32
        att = jnp.where(causal, att, -1e10)               # masked_fill(==0,-1e10)
        att = jax.nn.softmax(att, axis=-1)
        yh = jnp.dot(att.astype(jnp.bfloat16), vh,
                     preferred_element_type=jnp.float32)  # (T, D)
        # fused output projection: no concat, one head's att live at a time
        acc = acc + jnp.dot(yh.astype(jnp.bfloat16),
                            wo[h * D:(h + 1) * D, :],
                            preferred_element_type=jnp.float32)
    x = x + acc + bo_ref[0]

    # ---- MLP ----
    hn = _layernorm(x, ln2w_ref[0], ln2b_ref[0]).astype(jnp.bfloat16)
    h1 = _gelu(jnp.dot(hn, w1_ref[0], preferred_element_type=jnp.float32)
               + b1_ref[0])
    h2 = jnp.dot(h1.astype(jnp.bfloat16), w2_ref[0],
                 preferred_element_type=jnp.float32) + b2_ref[0]
    x = x + h2

    x_sc[...] = x

    @pl.when(layer == pl.num_programs(1) - 1)
    def _():
        o_ref[0] = x_sc[...].astype(o_ref.dtype)


def _head_kernel(x_ref, lnfw_ref, lnfb_ref, wh_ref, o_ref):
    """Final LayerNorm + one (TM, TN) tile of the vocabulary projection."""
    xn = _layernorm(x_ref[0], lnfw_ref[...], lnfb_ref[...]).astype(jnp.bfloat16)
    o_ref[0] = jnp.dot(xn, wh_ref[...], preferred_element_type=jnp.float32)


# ------------------------------- wrappers ----------------------------------

def _tile(n, pref):
    """Largest tile <= pref that divides n and is a multiple of 128, else n."""
    if n <= pref:
        return n
    for t in range(pref - pref % 128, 0, -128):
        if n % t == 0:
            return t
    return n


def transformer_blocks(x, blocks, n_head):
    B, T, C = x.shape
    names = ["ln1_w", "ln1_b", "wqkv", "bqkv", "wo", "bo",
             "ln2_w", "ln2_b", "w1", "b1", "w2", "b2"]
    ws = [blocks[n] for n in names]
    L = blocks["wqkv"].shape[0]

    def wspec(a):
        return pl.BlockSpec((1,) + a.shape[1:], lambda b, l: (l, 0, 0))

    in_specs = ([pl.BlockSpec((1, T, C), lambda b, l: (b, 0, 0))]
                + [wspec(a) for a in ws])

    # VMEM budget: double-buffered bf16 weight blocks + activations.
    step_bytes = (2 * (12 * C * C * 2 + 10 * C * 4)   # weights (bf16) + biases
                  + 2 * 2 * T * C * 4                 # x in/out blocks (f32)
                  + T * C * 4                         # residual carry scratch
                  + 7 * T * C * 4                     # qkv + mlp intermediates
                  + T * T * 4)                        # one head's att matrix
    vmem_limit = int(max(8 << 20, min(2 * step_bytes, 64 << 20)))

    flops = int(2 * B * L * T * C * (12 * C + 2 * T))
    trans = int(B * L * (n_head * T * T + 4 * T * C))
    bytes_acc = int(L * 12 * C * C * 2 + 2 * B * T * C * 4)

    return pl.pallas_call(
        functools.partial(_blocks_kernel, n_head=n_head),
        out_shape=jax.ShapeDtypeStruct((B, T, C), jnp.float32),
        grid=(B, L),
        in_specs=in_specs,
        out_specs=pl.BlockSpec((1, T, C), lambda b, l: (b, 0, 0)),
        scratch_shapes=[pltpu.VMEM((T, C), jnp.float32)],
        compiler_params=pltpu.CompilerParams(
            dimension_semantics=("parallel", "arbitrary"),
            vmem_limit_bytes=vmem_limit),
        cost_estimate=pl.CostEstimate(flops=flops, transcendentals=trans,
                                      bytes_accessed=bytes_acc),
    )(x, *ws)


def lm_head(x, lnf_w, lnf_b, head_w):
    B, T, C = x.shape
    V = head_w.shape[1]
    TM = _tile(T, 256)
    TN = _tile(V, 512)
    grid = (B, T // TM, V // TN)

    in_specs = [
        pl.BlockSpec((1, TM, C), lambda b, i, j: (b, i, 0)),
        pl.BlockSpec((1, C), lambda b, i, j: (0, 0)),
        pl.BlockSpec((1, C), lambda b, i, j: (0, 0)),
        pl.BlockSpec((C, TN), lambda b, i, j: (0, j)),
    ]
    out_specs = pl.BlockSpec((1, TM, TN), lambda b, i, j: (b, i, j))

    step_bytes = 2 * (C * TN * 2 + TM * C * 4 + TM * TN * 4)
    vmem_limit = int(max(8 << 20, min(2 * step_bytes, 64 << 20)))

    return pl.pallas_call(
        _head_kernel,
        out_shape=jax.ShapeDtypeStruct((B, T, V), jnp.float32),
        grid=grid,
        in_specs=in_specs,
        out_specs=out_specs,
        compiler_params=pltpu.CompilerParams(
            dimension_semantics=("parallel", "parallel", "arbitrary"),
            vmem_limit_bytes=vmem_limit),
        cost_estimate=pl.CostEstimate(
            flops=int(2 * B * T * C * V), transcendentals=0,
            bytes_accessed=int(C * V * 2 + B * T * C * 4 + B * T * V * 4)),
    )(x, lnf_w, lnf_b, head_w)


def gpt_forward(idx, params, n_head):
    # token + position embeddings (gather is glue; done in plain JAX)
    tok = jnp.take(params["tok_emb"], idx, axis=0)           # (B, T, C)
    pos = params["pos_emb"][:, :idx.shape[1], :]              # (1, T, C)
    x = tok + pos                                             # drop = identity (eval)
    x = transformer_blocks(x, params["blocks"], n_head)
    return lm_head(x, params["ln_f_w"], params["ln_f_b"], params["head_w"])


# ------------------------------ parameters ---------------------------------

def init_params(key, vocab_size, block_size, n_embd, n_layer):
    C = n_embd
    keys = jax.random.split(key, 6)

    def normal(k, shape):
        return 0.02 * jax.random.normal(k, shape, jnp.float32)

    bf16 = jnp.bfloat16
    params = {
        "tok_emb": normal(keys[0], (vocab_size, C)),
        "pos_emb": jnp.zeros((1, block_size, C), jnp.float32),
        "ln_f_w": jnp.ones((1, C), jnp.float32),
        "ln_f_b": jnp.zeros((1, C), jnp.float32),
        "head_w": normal(keys[1], (C, vocab_size)).astype(bf16),
        # per-layer weights stacked on a leading layer axis (streamed by grid)
        "blocks": {
            "ln1_w": jnp.ones((n_layer, 1, C), jnp.float32),
            "ln1_b": jnp.zeros((n_layer, 1, C), jnp.float32),
            "wqkv": normal(keys[2], (n_layer, C, 3 * C)).astype(bf16),
            "bqkv": jnp.zeros((n_layer, 1, 3 * C), jnp.float32),
            "wo": normal(keys[3], (n_layer, C, C)).astype(bf16),
            "bo": jnp.zeros((n_layer, 1, C), jnp.float32),
            "ln2_w": jnp.ones((n_layer, 1, C), jnp.float32),
            "ln2_b": jnp.zeros((n_layer, 1, C), jnp.float32),
            "w1": normal(keys[4], (n_layer, C, 4 * C)).astype(bf16),
            "b1": jnp.zeros((n_layer, 1, 4 * C), jnp.float32),
            "w2": normal(keys[5], (n_layer, 4 * C, C)).astype(bf16),
            "b2": jnp.zeros((n_layer, 1, C), jnp.float32),
        },
    }
    return params


# --------------------------------- main -------------------------------------

if __name__ == "__main__":
    vocab_size = 128
    block_size = 16
    n_embd = 32
    n_layer = 2
    n_head = 4
    batch, seq = 2, 8

    key = jax.random.PRNGKey(0)
    pkey, ikey = jax.random.split(key)
    params = init_params(pkey, vocab_size, block_size, n_embd, n_layer)
    idx = jax.random.randint(ikey, (batch, seq), 0, vocab_size, dtype=jnp.int32)

    logits = gpt_forward(idx, params, n_head)
    jax.block_until_ready(logits)
    assert logits.shape == (batch, seq, vocab_size)
    assert logits.dtype == jnp.float32
    assert bool(jnp.all(jnp.isfinite(logits)))
    print("KERNEL_OK")
</pallas_src>

<mosaic_0001>
module attributes {stable_mosaic.version = 11 : i64} {
  func.func @_blocks_kernel(%arg0: i32, %arg1: i32, %arg2: memref<1x8x32xf32, #tpu.memory_space<vmem>>, %arg3: memref<1x1x32xf32, #tpu.memory_space<vmem>>, %arg4: memref<1x1x32xf32, #tpu.memory_space<vmem>>, %arg5: memref<1x32x96xbf16, #tpu.memory_space<vmem>>, %arg6: memref<1x1x96xf32, #tpu.memory_space<vmem>>, %arg7: memref<1x32x32xbf16, #tpu.memory_space<vmem>>, %arg8: memref<1x1x32xf32, #tpu.memory_space<vmem>>, %arg9: memref<1x1x32xf32, #tpu.memory_space<vmem>>, %arg10: memref<1x1x32xf32, #tpu.memory_space<vmem>>, %arg11: memref<1x32x128xbf16, #tpu.memory_space<vmem>>, %arg12: memref<1x1x128xf32, #tpu.memory_space<vmem>>, %arg13: memref<1x128x32xbf16, #tpu.memory_space<vmem>>, %arg14: memref<1x1x32xf32, #tpu.memory_space<vmem>>, %arg15: memref<1x8x32xf32, #tpu.memory_space<vmem>>, %arg16: memref<8x32xf32, #tpu.memory_space<vmem>>) attributes {dimension_semantics = [#tpu.dimension_semantics<parallel>, #tpu.dimension_semantics<arbitrary>], iteration_bounds = array<i64: 2, 2>, scalar_prefetch = 0 : i64, scratch_operands = 1 : i64, tpu.core_type = #tpu.core_type<tc>, window_params = [{transform_indices = @transform_0, window_bounds = array<i64: 1, 8, 32>}, {transform_indices = @transform_1, window_bounds = array<i64: 1, 1, 32>}, {transform_indices = @transform_2, window_bounds = array<i64: 1, 1, 32>}, {transform_indices = @transform_3, window_bounds = array<i64: 1, 32, 96>}, {transform_indices = @transform_4, window_bounds = array<i64: 1, 1, 96>}, {transform_indices = @transform_5, window_bounds = array<i64: 1, 32, 32>}, {transform_indices = @transform_6, window_bounds = array<i64: 1, 1, 32>}, {transform_indices = @transform_7, window_bounds = array<i64: 1, 1, 32>}, {transform_indices = @transform_8, window_bounds = array<i64: 1, 1, 32>}, {transform_indices = @transform_9, window_bounds = array<i64: 1, 32, 128>}, {transform_indices = @transform_10, window_bounds = array<i64: 1, 1, 128>}, {transform_indices = @transform_11, window_bounds = array<i64: 1, 128, 32>}, {transform_indices = @transform_12, window_bounds = array<i64: 1, 1, 32>}, {transform_indices = @transform_13, window_bounds = array<i64: 1, 8, 32>}]} {
    %c0_i32 = arith.constant 0 : i32
    %0 = arith.cmpi eq, %arg1, %c0_i32 : i32
    %1 = arith.extui %0 : i1 to i32
    %c0_i32_0 = arith.constant 0 : i32
    %2 = arith.cmpi ne, %1, %c0_i32_0 : i32
    scf.if %2 {
      %c0_90 = arith.constant 0 : index
      %c0_91 = arith.constant 0 : index
      %c0_92 = arith.constant 0 : index
      %210 = vector.load %arg2[%c0_90, %c0_91, %c0_92] : memref<1x8x32xf32, #tpu.memory_space<vmem>>, vector<1x8x32xf32>
      %211 = vector.shape_cast %210 : vector<1x8x32xf32> to vector<8x32xf32>
      %c0_93 = arith.constant 0 : index
      %c0_94 = arith.constant 0 : index
      %212 = vector.load %arg16[%c0_93, %c0_94] : memref<8x32xf32, #tpu.memory_space<vmem>>, vector<8x32xf32>
      tpu.vector_store %arg16[%c0_93, %c0_94], %211 {strides = array<i32>} : memref<8x32xf32, #tpu.memory_space<vmem>>, vector<8x32xf32>,
    } else {
    }
    %c0 = arith.constant 0 : index
    %c0_1 = arith.constant 0 : index
    %3 = vector.load %arg16[%c0, %c0_1] : memref<8x32xf32, #tpu.memory_space<vmem>>, vector<8x32xf32>
    %c0_2 = arith.constant 0 : index
    %c0_3 = arith.constant 0 : index
    %c0_4 = arith.constant 0 : index
    %4 = vector.load %arg3[%c0_2, %c0_3, %c0_4] : memref<1x1x32xf32, #tpu.memory_space<vmem>>, vector<1x1x32xf32>
    %5 = vector.shape_cast %4 : vector<1x1x32xf32> to vector<1x32xf32>
    %c0_5 = arith.constant 0 : index
    %c0_6 = arith.constant 0 : index
    %c0_7 = arith.constant 0 : index
    %6 = vector.load %arg4[%c0_5, %c0_6, %c0_7] : memref<1x1x32xf32, #tpu.memory_space<vmem>>, vector<1x1x32xf32>
    %7 = vector.shape_cast %6 : vector<1x1x32xf32> to vector<1x32xf32>
    %cst = arith.constant dense<0.000000e+00> : vector<8xf32>
    %8 = vector.multi_reduction <add>, %3, %cst [1] : vector<8x32xf32> to vector<8xf32>
    %9 = vector.shape_cast %8 : vector<8xf32> to vector<8x1xf32>
    %cst_8 = arith.constant 3.200000e+01 : f32
    %10 = vector.broadcast %cst_8 : f32 to vector<8x1xf32>
    %11 = arith.divf %9, %10 : vector<8x1xf32>
    %12 = vector.broadcast %11 : vector<8x1xf32> to vector<8x32xf32>
    %13 = arith.subf %3, %12 : vector<8x32xf32>
    %14 = arith.mulf %13, %13 : vector<8x32xf32>
    %cst_9 = arith.constant dense<0.000000e+00> : vector<8xf32>
    %15 = vector.multi_reduction <add>, %14, %cst_9 [1] : vector<8x32xf32> to vector<8xf32>
    %16 = vector.shape_cast %15 : vector<8xf32> to vector<8x1xf32>
    %cst_10 = arith.constant 3.200000e+01 : f32
    %17 = vector.broadcast %cst_10 : f32 to vector<8x1xf32>
    %18 = arith.divf %16, %17 : vector<8x1xf32>
    %19 = vector.broadcast %11 : vector<8x1xf32> to vector<8x32xf32>
    %20 = arith.subf %3, %19 : vector<8x32xf32>
    %cst_11 = arith.constant 9.99999974E-6 : f32
    %21 = vector.broadcast %cst_11 : f32 to vector<8x1xf32>
    %22 = arith.addf %18, %21 : vector<8x1xf32>
    %23 = math.rsqrt %22 : vector<8x1xf32>
    %24 = vector.broadcast %23 : vector<8x1xf32> to vector<8x32xf32>
    %25 = arith.mulf %20, %24 : vector<8x32xf32>
    %26 = vector.broadcast %5 : vector<1x32xf32> to vector<8x32xf32>
    %27 = arith.mulf %25, %26 : vector<8x32xf32>
    %28 = vector.broadcast %7 : vector<1x32xf32> to vector<8x32xf32>
    %29 = arith.addf %27, %28 : vector<8x32xf32>
    %30 = arith.truncf %29 : vector<8x32xf32> to vector<8x32xbf16>
    %c0_12 = arith.constant 0 : index
    %c0_13 = arith.constant 0 : index
    %c0_14 = arith.constant 0 : index
    %31 = vector.load %arg5[%c0_12, %c0_13, %c0_14] : memref<1x32x96xbf16, #tpu.memory_space<vmem>>, vector<1x32x96xbf16>
    %32 = vector.shape_cast %31 : vector<1x32x96xbf16> to vector<32x96xbf16>
    %cst_15 = arith.constant dense<0.000000e+00> : vector<8x96xf32>
    %33 = tpu.matmul %30, %32, %cst_15 {dimension_numbers = #tpu.dot_dimension_numbers<[1], [0], [0], [1], [0, 0, 1, 1], [], []>} : vector<8x32xbf16>, vector<32x96xbf16>, vector<8x96xf32> -> vector<8x96xf32>
    %c0_16 = arith.constant 0 : index
    %c0_17 = arith.constant 0 : index
    %c0_18 = arith.constant 0 : index
    %34 = vector.load %arg6[%c0_16, %c0_17, %c0_18] : memref<1x1x96xf32, #tpu.memory_space<vmem>>, vector<1x1x96xf32>
    %35 = vector.shape_cast %34 : vector<1x1x96xf32> to vector<1x96xf32>
    %36 = vector.broadcast %35 : vector<1x96xf32> to vector<8x96xf32>
    %37 = arith.addf %33, %36 : vector<8x96xf32>
    %38 = arith.truncf %37 : vector<8x96xf32> to vector<8x96xbf16>
    %39 = tpu.iota {dimensions = array<i32: 0>} : vector<8x8xi32>
    %40 = tpu.iota {dimensions = array<i32: 1>} : vector<8x8xi32>
    %41 = arith.cmpi sge, %39, %40 : vector<8x8xi32>
    %c0_19 = arith.constant 0 : index
    %c0_20 = arith.constant 0 : index
    %c0_21 = arith.constant 0 : index
    %42 = vector.load %arg7[%c0_19, %c0_20, %c0_21] : memref<1x32x32xbf16, #tpu.memory_space<vmem>>, vector<1x32x32xbf16>
    %43 = vector.shape_cast %42 : vector<1x32x32xbf16> to vector<32x32xbf16>
    %cst_22 = arith.constant 0.000000e+00 : f32
    %44 = vector.broadcast %cst_22 : f32 to vector<8x32xf32>
    %45 = vector.extract_strided_slice %38 {offsets = [0, 0], sizes = [8, 8], strides = [1, 1]} : vector<8x96xbf16> to vector<8x8xbf16>
    %46 = vector.extract_strided_slice %38 {offsets = [0, 32], sizes = [8, 8], strides = [1, 1]} : vector<8x96xbf16> to vector<8x8xbf16>
    %47 = vector.extract_strided_slice %38 {offsets = [0, 64], sizes = [8, 8], strides = [1, 1]} : vector<8x96xbf16> to vector<8x8xbf16>
    %cst_23 = arith.constant dense<0.000000e+00> : vector<8x8xf32>
    %48 = tpu.matmul %45, %46, %cst_23 {dimension_numbers = #tpu.dot_dimension_numbers<[1], [1], [0], [0], [0, 0, 1, 0], [], []>} : vector<8x8xbf16>, vector<8x8xbf16>, vector<8x8xf32> -> vector<8x8xf32>
    %cst_24 = arith.constant 0.353553385 : f32
    %49 = vector.broadcast %cst_24 : f32 to vector<8x8xf32>
    %50 = arith.mulf %48, %49 : vector<8x8xf32>
    %cst_25 = arith.constant -1.000000e+10 : f32
    %51 = vector.broadcast %cst_25 : f32 to vector<8x8xf32>
    %52 = arith.select %41, %50, %51 : vector<8x8xi1>, vector<8x8xf32>
    %cst_26 = arith.constant dense<0xFF800000> : vector<8xf32>
    %53 = vector.multi_reduction <maximumf>, %52, %cst_26 [1] : vector<8x8xf32> to vector<8xf32>
    %cst_27 = arith.constant 0xFF800000 : f32
    %54 = vector.broadcast %cst_27 : f32 to vector<8xf32>
    %55 = arith.maximumf %54, %53 : vector<8xf32>
    %56 = vector.shape_cast %55 : vector<8xf32> to vector<8x1xf32>
    %57 = vector.broadcast %56 : vector<8x1xf32> to vector<8x8xf32>
    %58 = arith.subf %52, %57 : vector<8x8xf32>
    %59 = math.exp %58 : vector<8x8xf32>
    %cst_28 = arith.constant dense<0.000000e+00> : vector<8xf32>
    %60 = vector.multi_reduction <add>, %59, %cst_28 [1] : vector<8x8xf32> to vector<8xf32>
    %61 = vector.shape_cast %60 : vector<8xf32> to vector<8x1xf32>
    %62 = vector.broadcast %61 : vector<8x1xf32> to vector<8x8xf32>
    %63 = arith.divf %59, %62 : vector<8x8xf32>
    %64 = arith.truncf %63 : vector<8x8xf32> to vector<8x8xbf16>
    %cst_29 = arith.constant dense<0.000000e+00> : vector<8x8xf32>
    %65 = tpu.matmul %64, %47, %cst_29 {dimension_numbers = #tpu.dot_dimension_numbers<[1], [0], [0], [1], [0, 0, 1, 1], [], []>} : vector<8x8xbf16>, vector<8x8xbf16>, vector<8x8xf32> -> vector<8x8xf32>
    %66 = arith.truncf %65 : vector<8x8xf32> to vector<8x8xbf16>
    %67 = vector.extract_strided_slice %43 {offsets = [0, 0], sizes = [8, 32], strides = [1, 1]} : vector<32x32xbf16> to vector<8x32xbf16>
    %cst_30 = arith.constant dense<0.000000e+00> : vector<8x32xf32>
    %68 = tpu.matmul %66, %67, %cst_30 {dimension_numbers = #tpu.dot_dimension_numbers<[1], [0], [0], [1], [0, 0, 1, 1], [], []>} : vector<8x8xbf16>, vector<8x32xbf16>, vector<8x32xf32> -> vector<8x32xf32>
    %69 = arith.addf %44, %68 : vector<8x32xf32>
    %70 = vector.extract_strided_slice %38 {offsets = [0, 8], sizes = [8, 8], strides = [1, 1]} : vector<8x96xbf16> to vector<8x8xbf16>
    %71 = vector.extract_strided_slice %38 {offsets = [0, 40], sizes = [8, 8], strides = [1, 1]} : vector<8x96xbf16> to vector<8x8xbf16>
    %72 = vector.extract_strided_slice %38 {offsets = [0, 72], sizes = [8, 8], strides = [1, 1]} : vector<8x96xbf16> to vector<8x8xbf16>
    %cst_31 = arith.constant dense<0.000000e+00> : vector<8x8xf32>
    %73 = tpu.matmul %70, %71, %cst_31 {dimension_numbers = #tpu.dot_dimension_numbers<[1], [1], [0], [0], [0, 0, 1, 0], [], []>} : vector<8x8xbf16>, vector<8x8xbf16>, vector<8x8xf32> -> vector<8x8xf32>
    %cst_32 = arith.constant 0.353553385 : f32
    %74 = vector.broadcast %cst_32 : f32 to vector<8x8xf32>
    %75 = arith.mulf %73, %74 : vector<8x8xf32>
    %cst_33 = arith.constant -1.000000e+10 : f32
    %76 = vector.broadcast %cst_33 : f32 to vector<8x8xf32>
    %77 = arith.select %41, %75, %76 : vector<8x8xi1>, vector<8x8xf32>
    %cst_34 = arith.constant dense<0xFF800000> : vector<8xf32>
    %78 = vector.multi_reduction <maximumf>, %77, %cst_34 [1] : vector<8x8xf32> to vector<8xf32>
    %cst_35 = arith.constant 0xFF800000 : f32
    %79 = vector.broadcast %cst_35 : f32 to vector<8xf32>
    %80 = arith.maximumf %79, %78 : vector<8xf32>
    %81 = vector.shape_cast %80 : vector<8xf32> to vector<8x1xf32>
    %82 = vector.broadcast %81 : vector<8x1xf32> to vector<8x8xf32>
    %83 = arith.subf %77, %82 : vector<8x8xf32>
    %84 = math.exp %83 : vector<8x8xf32>
    %cst_36 = arith.constant dense<0.000000e+00> : vector<8xf32>
    %85 = vector.multi_reduction <add>, %84, %cst_36 [1] : vector<8x8xf32> to vector<8xf32>
    %86 = vector.shape_cast %85 : vector<8xf32> to vector<8x1xf32>
    %87 = vector.broadcast %86 : vector<8x1xf32> to vector<8x8xf32>
    %88 = arith.divf %84, %87 : vector<8x8xf32>
    %89 = arith.truncf %88 : vector<8x8xf32> to vector<8x8xbf16>
    %cst_37 = arith.constant dense<0.000000e+00> : vector<8x8xf32>
    %90 = tpu.matmul %89, %72, %cst_37 {dimension_numbers = #tpu.dot_dimension_numbers<[1], [0], [0], [1], [0, 0, 1, 1], [], []>} : vector<8x8xbf16>, vector<8x8xbf16>, vector<8x8xf32> -> vector<8x8xf32>
    %91 = arith.truncf %90 : vector<8x8xf32> to vector<8x8xbf16>
    %92 = vector.extract_strided_slice %43 {offsets = [8, 0], sizes = [8, 32], strides = [1, 1]} : vector<32x32xbf16> to vector<8x32xbf16>
    %cst_38 = arith.constant dense<0.000000e+00> : vector<8x32xf32>
    %93 = tpu.matmul %91, %92, %cst_38 {dimension_numbers = #tpu.dot_dimension_numbers<[1], [0], [0], [1], [0, 0, 1, 1], [], []>} : vector<8x8xbf16>, vector<8x32xbf16>, vector<8x32xf32> -> vector<8x32xf32>
    %94 = arith.addf %69, %93 : vector<8x32xf32>
    %95 = vector.extract_strided_slice %38 {offsets = [0, 16], sizes = [8, 8], strides = [1, 1]} : vector<8x96xbf16> to vector<8x8xbf16>
    %96 = vector.extract_strided_slice %38 {offsets = [0, 48], sizes = [8, 8], strides = [1, 1]} : vector<8x96xbf16> to vector<8x8xbf16>
    %97 = vector.extract_strided_slice %38 {offsets = [0, 80], sizes = [8, 8], strides = [1, 1]} : vector<8x96xbf16> to vector<8x8xbf16>
    %cst_39 = arith.constant dense<0.000000e+00> : vector<8x8xf32>
    %98 = tpu.matmul %95, %96, %cst_39 {dimension_numbers = #tpu.dot_dimension_numbers<[1], [1], [0], [0], [0, 0, 1, 0], [], []>} : vector<8x8xbf16>, vector<8x8xbf16>, vector<8x8xf32> -> vector<8x8xf32>
    %cst_40 = arith.constant 0.353553385 : f32
    %99 = vector.broadcast %cst_40 : f32 to vector<8x8xf32>
    %100 = arith.mulf %98, %99 : vector<8x8xf32>
    %cst_41 = arith.constant -1.000000e+10 : f32
    %101 = vector.broadcast %cst_41 : f32 to vector<8x8xf32>
    %102 = arith.select %41, %100, %101 : vector<8x8xi1>, vector<8x8xf32>
    %cst_42 = arith.constant dense<0xFF800000> : vector<8xf32>
    %103 = vector.multi_reduction <maximumf>, %102, %cst_42 [1] : vector<8x8xf32> to vector<8xf32>
    %cst_43 = arith.constant 0xFF800000 : f32
    %104 = vector.broadcast %cst_43 : f32 to vector<8xf32>
    %105 = arith.maximumf %104, %103 : vector<8xf32>
    %106 = vector.shape_cast %105 : vector<8xf32> to vector<8x1xf32>
    %107 = vector.broadcast %106 : vector<8x1xf32> to vector<8x8xf32>
    %108 = arith.subf %102, %107 : vector<8x8xf32>
    %109 = math.exp %108 : vector<8x8xf32>
    %cst_44 = arith.constant dense<0.000000e+00> : vector<8xf32>
    %110 = vector.multi_reduction <add>, %109, %cst_44 [1] : vector<8x8xf32> to vector<8xf32>
    %111 = vector.shape_cast %110 : vector<8xf32> to vector<8x1xf32>
    %112 = vector.broadcast %111 : vector<8x1xf32> to vector<8x8xf32>
    %113 = arith.divf %109, %112 : vector<8x8xf32>
    %114 = arith.truncf %113 : vector<8x8xf32> to vector<8x8xbf16>
    %cst_45 = arith.constant dense<0.000000e+00> : vector<8x8xf32>
    %115 = tpu.matmul %114, %97, %cst_45 {dimension_numbers = #tpu.dot_dimension_numbers<[1], [0], [0], [1], [0, 0, 1, 1], [], []>} : vector<8x8xbf16>, vector<8x8xbf16>, vector<8x8xf32> -> vector<8x8xf32>
    %116 = arith.truncf %115 : vector<8x8xf32> to vector<8x8xbf16>
    %117 = vector.extract_strided_slice %43 {offsets = [16, 0], sizes = [8, 32], strides = [1, 1]} : vector<32x32xbf16> to vector<8x32xbf16>
    %cst_46 = arith.constant dense<0.000000e+00> : vector<8x32xf32>
    %118 = tpu.matmul %116, %117, %cst_46 {dimension_numbers = #tpu.dot_dimension_numbers<[1], [0], [0], [1], [0, 0, 1, 1], [], []>} : vector<8x8xbf16>, vector<8x32xbf16>, vector<8x32xf32> -> vector<8x32xf32>
    %119 = arith.addf %94, %118 : vector<8x32xf32>
    %120 = vector.extract_strided_slice %38 {offsets = [0, 24], sizes = [8, 8], strides = [1, 1]} : vector<8x96xbf16> to vector<8x8xbf16>
    %121 = vector.extract_strided_slice %38 {offsets = [0, 56], sizes = [8, 8], strides = [1, 1]} : vector<8x96xbf16> to vector<8x8xbf16>
    %122 = vector.extract_strided_slice %38 {offsets = [0, 88], sizes = [8, 8], strides = [1, 1]} : vector<8x96xbf16> to vector<8x8xbf16>
    %cst_47 = arith.constant dense<0.000000e+00> : vector<8x8xf32>
    %123 = tpu.matmul %120, %121, %cst_47 {dimension_numbers = #tpu.dot_dimension_numbers<[1], [1], [0], [0], [0, 0, 1, 0], [], []>} : vector<8x8xbf16>, vector<8x8xbf16>, vector<8x8xf32> -> vector<8x8xf32>
    %cst_48 = arith.constant 0.353553385 : f32
    %124 = vector.broadcast %cst_48 : f32 to vector<8x8xf32>
    %125 = arith.mulf %123, %124 : vector<8x8xf32>
    %cst_49 = arith.constant -1.000000e+10 : f32
    %126 = vector.broadcast %cst_49 : f32 to vector<8x8xf32>
    %127 = arith.select %41, %125, %126 : vector<8x8xi1>, vector<8x8xf32>
    %cst_50 = arith.constant dense<0xFF800000> : vector<8xf32>
    %128 = vector.multi_reduction <maximumf>, %127, %cst_50 [1] : vector<8x8xf32> to vector<8xf32>
    %cst_51 = arith.constant 0xFF800000 : f32
    %129 = vector.broadcast %cst_51 : f32 to vector<8xf32>
    %130 = arith.maximumf %129, %128 : vector<8xf32>
    %131 = vector.shape_cast %130 : vector<8xf32> to vector<8x1xf32>
    %132 = vector.broadcast %131 : vector<8x1xf32> to vector<8x8xf32>
    %133 = arith.subf %127, %132 : vector<8x8xf32>
    %134 = math.exp %133 : vector<8x8xf32>
    %cst_52 = arith.constant dense<0.000000e+00> : vector<8xf32>
    %135 = vector.multi_reduction <add>, %134, %cst_52 [1] : vector<8x8xf32> to vector<8xf32>
    %136 = vector.shape_cast %135 : vector<8xf32> to vector<8x1xf32>
    %137 = vector.broadcast %136 : vector<8x1xf32> to vector<8x8xf32>
    %138 = arith.divf %134, %137 : vector<8x8xf32>
    %139 = arith.truncf %138 : vector<8x8xf32> to vector<8x8xbf16>
    %cst_53 = arith.constant dense<0.000000e+00> : vector<8x8xf32>
    %140 = tpu.matmul %139, %122, %cst_53 {dimension_numbers = #tpu.dot_dimension_numbers<[1], [0], [0], [1], [0, 0, 1, 1], [], []>} : vector<8x8xbf16>, vector<8x8xbf16>, vector<8x8xf32> -> vector<8x8xf32>
    %141 = arith.truncf %140 : vector<8x8xf32> to vector<8x8xbf16>
    %142 = vector.extract_strided_slice %43 {offsets = [24, 0], sizes = [8, 32], strides = [1, 1]} : vector<32x32xbf16> to vector<8x32xbf16>
    %cst_54 = arith.constant dense<0.000000e+00> : vector<8x32xf32>
    %143 = tpu.matmul %141, %142, %cst_54 {dimension_numbers = #tpu.dot_dimension_numbers<[1], [0], [0], [1], [0, 0, 1, 1], [], []>} : vector<8x8xbf16>, vector<8x32xbf16>, vector<8x32xf32> -> vector<8x32xf32>
    %144 = arith.addf %119, %143 : vector<8x32xf32>
    %145 = arith.addf %3, %144 : vector<8x32xf32>
    %c0_55 = arith.constant 0 : index
    %c0_56 = arith.constant 0 : index
    %c0_57 = arith.constant 0 : index
    %146 = vector.load %arg8[%c0_55, %c0_56, %c0_57] : memref<1x1x32xf32, #tpu.memory_space<vmem>>, vector<1x1x32xf32>
    %147 = vector.shape_cast %146 : vector<1x1x32xf32> to vector<1x32xf32>
    %148 = vector.broadcast %147 : vector<1x32xf32> to vector<8x32xf32>
    %149 = arith.addf %145, %148 : vector<8x32xf32>
    %c0_58 = arith.constant 0 : index
    %c0_59 = arith.constant 0 : index
    %c0_60 = arith.constant 0 : index
    %150 = vector.load %arg9[%c0_58, %c0_59, %c0_60] : memref<1x1x32xf32, #tpu.memory_space<vmem>>, vector<1x1x32xf32>
    %151 = vector.shape_cast %150 : vector<1x1x32xf32> to vector<1x32xf32>
    %c0_61 = arith.constant 0 : index
    %c0_62 = arith.constant 0 : index
    %c0_63 = arith.constant 0 : index
    %152 = vector.load %arg10[%c0_61, %c0_62, %c0_63] : memref<1x1x32xf32, #tpu.memory_space<vmem>>, vector<1x1x32xf32>
    %153 = vector.shape_cast %152 : vector<1x1x32xf32> to vector<1x32xf32>
    %cst_64 = arith.constant dense<0.000000e+00> : vector<8xf32>
    %154 = vector.multi_reduction <add>, %149, %cst_64 [1] : vector<8x32xf32> to vector<8xf32>
    %155 = vector.shape_cast %154 : vector<8xf32> to vector<8x1xf32>
    %cst_65 = arith.constant 3.200000e+01 : f32
    %156 = vector.broadcast %cst_65 : f32 to vector<8x1xf32>
    %157 = arith.divf %155, %156 : vector<8x1xf32>
    %158 = vector.broadcast %157 : vector<8x1xf32> to vector<8x32xf32>
    %159 = arith.subf %149, %158 : vector<8x32xf32>
    %160 = arith.mulf %159, %159 : vector<8x32xf32>
    %cst_66 = arith.constant dense<0.000000e+00> : vector<8xf32>
    %161 = vector.multi_reduction <add>, %160, %cst_66 [1] : vector<8x32xf32> to vector<8xf32>
    %162 = vector.shape_cast %161 : vector<8xf32> to vector<8x1xf32>
    %cst_67 = arith.constant 3.200000e+01 : f32
    %163 = vector.broadcast %cst_67 : f32 to vector<8x1xf32>
    %164 = arith.divf %162, %163 : vector<8x1xf32>
    %165 = vector.broadcast %157 : vector<8x1xf32> to vector<8x32xf32>
    %166 = arith.subf %149, %165 : vector<8x32xf32>
    %cst_68 = arith.constant 9.99999974E-6 : f32
    %167 = vector.broadcast %cst_68 : f32 to vector<8x1xf32>
    %168 = arith.addf %164, %167 : vector<8x1xf32>
    %169 = math.rsqrt %168 : vector<8x1xf32>
    %170 = vector.broadcast %169 : vector<8x1xf32> to vector<8x32xf32>
    %171 = arith.mulf %166, %170 : vector<8x32xf32>
    %172 = vector.broadcast %151 : vector<1x32xf32> to vector<8x32xf32>
    %173 = arith.mulf %171, %172 : vector<8x32xf32>
    %174 = vector.broadcast %153 : vector<1x32xf32> to vector<8x32xf32>
    %175 = arith.addf %173, %174 : vector<8x32xf32>
    %176 = arith.truncf %175 : vector<8x32xf32> to vector<8x32xbf16>
    %c0_69 = arith.constant 0 : index
    %c0_70 = arith.constant 0 : index
    %c0_71 = arith.constant 0 : index
    %177 = vector.load %arg11[%c0_69, %c0_70, %c0_71] : memref<1x32x128xbf16, #tpu.memory_space<vmem>>, vector<1x32x128xbf16>
    %178 = vector.shape_cast %177 : vector<1x32x128xbf16> to vector<32x128xbf16>
    %cst_72 = arith.constant dense<0.000000e+00> : vector<8x128xf32>
    %179 = tpu.matmul %176, %178, %cst_72 {dimension_numbers = #tpu.dot_dimension_numbers<[1], [0], [0], [1], [0, 0, 1, 1], [], []>} : vector<8x32xbf16>, vector<32x128xbf16>, vector<8x128xf32> -> vector<8x128xf32>
    %c0_73 = arith.constant 0 : index
    %c0_74 = arith.constant 0 : index
    %c0_75 = arith.constant 0 : index
    %180 = vector.load %arg12[%c0_73, %c0_74, %c0_75] : memref<1x1x128xf32, #tpu.memory_space<vmem>>, vector<1x1x128xf32>
    %181 = vector.shape_cast %180 : vector<1x1x128xf32> to vector<1x128xf32>
    %182 = vector.broadcast %181 : vector<1x128xf32> to vector<8x128xf32>
    %183 = arith.addf %179, %182 : vector<8x128xf32>
    %cst_76 = arith.constant 5.000000e-01 : f32
    %184 = vector.broadcast %cst_76 : f32 to vector<8x128xf32>
    %185 = arith.mulf %184, %183 : vector<8x128xf32>
    %cst_77 = arith.constant 4.471500e-02 : f32
    %186 = vector.broadcast %cst_77 : f32 to vector<8x128xf32>
    %187 = arith.mulf %186, %183 : vector<8x128xf32>
    %188 = arith.mulf %187, %183 : vector<8x128xf32>
    %189 = arith.mulf %188, %183 : vector<8x128xf32>
    %190 = arith.addf %183, %189 : vector<8x128xf32>
    %cst_78 = arith.constant 0.797884583 : f32
    %191 = vector.broadcast %cst_78 : f32 to vector<8x128xf32>
    %192 = arith.mulf %191, %190 : vector<8x128xf32>
    %193 = math.tanh %192 : vector<8x128xf32>
    %cst_79 = arith.constant 1.000000e+00 : f32
    %194 = vector.broadcast %cst_79 : f32 to vector<8x128xf32>
    %195 = arith.addf %194, %193 : vector<8x128xf32>
    %196 = arith.mulf %185, %195 : vector<8x128xf32>
    %197 = arith.truncf %196 : vector<8x128xf32> to vector<8x128xbf16>
    %c0_80 = arith.constant 0 : index
    %c0_81 = arith.constant 0 : index
    %c0_82 = arith.constant 0 : index
    %198 = vector.load %arg13[%c0_80, %c0_81, %c0_82] : memref<1x128x32xbf16, #tpu.memory_space<vmem>>, vector<1x128x32xbf16>
    %199 = vector.shape_cast %198 : vector<1x128x32xbf16> to vector<128x32xbf16>
    %cst_83 = arith.constant dense<0.000000e+00> : vector<8x32xf32>
    %200 = tpu.matmul %197, %199, %cst_83 {dimension_numbers = #tpu.dot_dimension_numbers<[1], [0], [0], [1], [0, 0, 1, 1], [], []>} : vector<8x128xbf16>, vector<128x32xbf16>, vector<8x32xf32> -> vector<8x32xf32>
    %c0_84 = arith.constant 0 : index
    %c0_85 = arith.constant 0 : index
    %c0_86 = arith.constant 0 : index
    %201 = vector.load %arg14[%c0_84, %c0_85, %c0_86] : memref<1x1x32xf32, #tpu.memory_space<vmem>>, vector<1x1x32xf32>
    %202 = vector.shape_cast %201 : vector<1x1x32xf32> to vector<1x32xf32>
    %203 = vector.broadcast %202 : vector<1x32xf32> to vector<8x32xf32>
    %204 = arith.addf %200, %203 : vector<8x32xf32>
    %205 = arith.addf %149, %204 : vector<8x32xf32>
    %c0_87 = arith.constant 0 : index
    %c0_88 = arith.constant 0 : index
    %206 = vector.load %arg16[%c0_87, %c0_88] : memref<8x32xf32, #tpu.memory_space<vmem>>, vector<8x32xf32>
    tpu.vector_store %arg16[%c0_87, %c0_88], %205 {strides = array<i32>} : memref<8x32xf32, #tpu.memory_space<vmem>>, vector<8x32xf32>,
    %c1_i32 = arith.constant 1 : i32
    %207 = arith.cmpi eq, %arg1, %c1_i32 : i32
    %208 = arith.extui %207 : i1 to i32
    %c0_i32_89 = arith.constant 0 : i32
    %209 = arith.cmpi ne, %208, %c0_i32_89 : i32
    scf.if %209 {
      %c0_90 = arith.constant 0 : index
      %c0_91 = arith.constant 0 : index
      %210 = vector.load %arg16[%c0_90, %c0_91] : memref<8x32xf32, #tpu.memory_space<vmem>>, vector<8x32xf32>
      %c0_92 = arith.constant 0 : index
      %c0_93 = arith.constant 0 : index
      %c0_94 = arith.constant 0 : index
      %211 = vector.load %arg15[%c0_92, %c0_93, %c0_94] : memref<1x8x32xf32, #tpu.memory_space<vmem>>, vector<1x8x32xf32>
      %212 = vector.shape_cast %211 : vector<1x8x32xf32> to vector<8x32xf32>
      %213 = vector.shape_cast %210 : vector<8x32xf32> to vector<1x8x32xf32>
      tpu.vector_store %arg15[%c0_92, %c0_93, %c0_94], %213 {strides = array<i32>} : memref<1x8x32xf32, #tpu.memory_space<vmem>>, vector<1x8x32xf32>,
    } else {
    }
    return
  }
  func.func @transform_0(%arg0: i32, %arg1: i32) -> (i32, i32, i32) {
    %c0_i32 = arith.constant 0 : i32
    %c0_i32_0 = arith.constant 0 : i32
    %c0_i32_1 = arith.constant 0 : i32
    return %arg0, %c0_i32, %c0_i32_0 : i32, i32, i32
  }
  func.func @transform_1(%arg0: i32, %arg1: i32) -> (i32, i32, i32) {
    %c0_i32 = arith.constant 0 : i32
    %c0_i32_0 = arith.constant 0 : i32
    %c0_i32_1 = arith.constant 0 : i32
    return %arg1, %c0_i32, %c0_i32_0 : i32, i32, i32
  }
  func.func @transform_2(%arg0: i32, %arg1: i32) -> (i32, i32, i32) {
    %c0_i32 = arith.constant 0 : i32
    %c0_i32_0 = arith.constant 0 : i32
    %c0_i32_1 = arith.constant 0 : i32
    return %arg1, %c0_i32, %c0_i32_0 : i32, i32, i32
  }
  func.func @transform_3(%arg0: i32, %arg1: i32) -> (i32, i32, i32) {
    %c0_i32 = arith.constant 0 : i32
    %c0_i32_0 = arith.constant 0 : i32
    %c0_i32_1 = arith.constant 0 : i32
    return %arg1, %c0_i32, %c0_i32_0 : i32, i32, i32
  }
  func.func @transform_4(%arg0: i32, %arg1: i32) -> (i32, i32, i32) {
    %c0_i32 = arith.constant 0 : i32
    %c0_i32_0 = arith.constant 0 : i32
    %c0_i32_1 = arith.constant 0 : i32
    return %arg1, %c0_i32, %c0_i32_0 : i32, i32, i32
  }
  func.func @transform_5(%arg0: i32, %arg1: i32) -> (i32, i32, i32) {
    %c0_i32 = arith.constant 0 : i32
    %c0_i32_0 = arith.constant 0 : i32
    %c0_i32_1 = arith.constant 0 : i32
    return %arg1, %c0_i32, %c0_i32_0 : i32, i32, i32
  }
  func.func @transform_6(%arg0: i32, %arg1: i32) -> (i32, i32, i32) {
    %c0_i32 = arith.constant 0 : i32
    %c0_i32_0 = arith.constant 0 : i32
    %c0_i32_1 = arith.constant 0 : i32
    return %arg1, %c0_i32, %c0_i32_0 : i32, i32, i32
  }
  func.func @transform_7(%arg0: i32, %arg1: i32) -> (i32, i32, i32) {
    %c0_i32 = arith.constant 0 : i32
    %c0_i32_0 = arith.constant 0 : i32
    %c0_i32_1 = arith.constant 0 : i32
    return %arg1, %c0_i32, %c0_i32_0 : i32, i32, i32
  }
  func.func @transform_8(%arg0: i32, %arg1: i32) -> (i32, i32, i32) {
    %c0_i32 = arith.constant 0 : i32
    %c0_i32_0 = arith.constant 0 : i32
    %c0_i32_1 = arith.constant 0 : i32
    return %arg1, %c0_i32, %c0_i32_0 : i32, i32, i32
  }
  func.func @transform_9(%arg0: i32, %arg1: i32) -> (i32, i32, i32) {
    %c0_i32 = arith.constant 0 : i32
    %c0_i32_0 = arith.constant 0 : i32
    %c0_i32_1 = arith.constant 0 : i32
    return %arg1, %c0_i32, %c0_i32_0 : i32, i32, i32
  }
  func.func @transform_10(%arg0: i32, %arg1: i32) -> (i32, i32, i32) {
    %c0_i32 = arith.constant 0 : i32
    %c0_i32_0 = arith.constant 0 : i32
    %c0_i32_1 = arith.constant 0 : i32
    return %arg1, %c0_i32, %c0_i32_0 : i32, i32, i32
  }
  func.func @transform_11(%arg0: i32, %arg1: i32) -> (i32, i32, i32) {
    %c0_i32 = arith.constant 0 : i32
    %c0_i32_0 = arith.constant 0 : i32
    %c0_i32_1 = arith.constant 0 : i32
    return %arg1, %c0_i32, %c0_i32_0 : i32, i32, i32
  }
  func.func @transform_12(%arg0: i32, %arg1: i32) -> (i32, i32, i32) {
    %c0_i32 = arith.constant 0 : i32
    %c0_i32_0 = arith.constant 0 : i32
    %c0_i32_1 = arith.constant 0 : i32
    return %arg1, %c0_i32, %c0_i32_0 : i32, i32, i32
  }
  func.func @transform_13(%arg0: i32, %arg1: i32) -> (i32, i32, i32) {
    %c0_i32 = arith.constant 0 : i32
    %c0_i32_0 = arith.constant 0 : i32
    %c0_i32_1 = arith.constant 0 : i32
    return %arg0, %c0_i32, %c0_i32_0 : i32, i32, i32
  }
}

</mosaic_0001>

<llo_original>
// kernel: tpu_custom_call.1
$region0: #{tpu_custom_call.1}
  #allocation0 [shape = 'u32[]', space=smem, size = 0x4, offset = 0x4, fixed_abs, tag = 'smem constant byte address 0x4 - core index']
  #allocation1 [shape = 'u32[144,128]{1,0:T(1,128)}', space=vmem, size = 0x12000, scoped, tag = 'internal scratch']
  #allocation2 [shape = 'f32[8,32]{1,0:T(8,128)}', space=vmem, size = 0x1000, scoped, tag = 'scratch operand']
  %s0 = inlined_call_operand.vmem [shape: f32[2,8,32], index: 0, kind: input, shape index: {}]
  %s1 = inlined_call_operand.vmem [shape: f32[2,1,32], index: 1, kind: input, shape index: {}]
  %s2 = inlined_call_operand.vmem [shape: f32[2,1,32], index: 2, kind: input, shape index: {}]
  %s3 = inlined_call_operand.vmem [shape: bf16[2,32,96], index: 3, kind: input, shape index: {}]
  %s4 = inlined_call_operand.vmem [shape: f32[2,1,96], index: 4, kind: input, shape index: {}]
  %s5 = inlined_call_operand.vmem [shape: bf16[2,32,32], index: 5, kind: input, shape index: {}]
  %s6 = inlined_call_operand.vmem [shape: f32[2,1,32], index: 6, kind: input, shape index: {}]
  %s7 = inlined_call_operand.vmem [shape: f32[2,1,32], index: 7, kind: input, shape index: {}]
  %s8 = inlined_call_operand.vmem [shape: f32[2,1,32], index: 8, kind: input, shape index: {}]
  %s9 = inlined_call_operand.vmem [shape: bf16[2,32,128], index: 9, kind: input, shape index: {}]
  %s10 = inlined_call_operand.vmem [shape: f32[2,1,128], index: 10, kind: input, shape index: {}]
  %s11 = inlined_call_operand.vmem [shape: bf16[2,128,32], index: 11, kind: input, shape index: {}]
  %s12 = inlined_call_operand.vmem [shape: f32[2,1,32], index: 12, kind: input, shape index: {}]
  %s13 = inlined_call_operand.hbm [shape: f32[2,8,32], index: 13, kind: output, shape index: {}]
  %s14 = sld [smem:[#allocation0]]
  $region93: #{tpu_custom_call.1} parent=0
    _
  %s16 = ssub.s32 1, %s14
  %s17 = scalar_select 0, %s16, %s14
  $region1: #{tpu_custom_call.1} parent=0
    #allocation3 [shape = 'u8[8192]{0}', space=vmem, size = 0x2000, scoped, tag = 'output window, operand 0']
    #allocation4 [shape = 's32[2]{0}', space=sflag, size = 0x8, scoped, tag = 'scoped memory for tpu_custom_call.1']
    %18 = vsyncpa [#allocation4], 0
    %s19 = scalar_lea.sflag [#allocation4], 1
    %20 = vsyncpa %s19, 0
    loop: start=0, step=1, limit=6
    $region2: #{tpu_custom_call.1} parent=1 // loop_pre_header
      _
    $region3: #{tpu_custom_call.1} parent=1 // loop_header
      %s22 = sphi 0, %s26
      %p23 = scmp.ge.s32.totalorder %s22, 6
      %s29 = sphi 0, %s41
      %s30 = sphi 0, %s37
      %s31 = sphi 0, %s29
      %s32 = sphi 0, %s30
      %s33 = sphi 0, %s31
      %s34 = sphi 0, %s32
      %s44 = sphi 0, %s46
      %s47 = sphi 0, %s44
      %s48 = sphi 0, %s47
      %s64 = sphi 0, %s48
      %s70 = sphi 0, %s72
      %s73 = sphi 0, %s70
      %s74 = sphi 0, %s73
      %s90 = sphi 0, %s74
      %s96 = sphi 0, %s98
      %s99 = sphi 0, %s96
      %s100 = sphi 0, %s99
      %s116 = sphi 0, %s100
      %s122 = sphi 0, %s124
      %s125 = sphi 0, %s122
      %s126 = sphi 0, %s125
      %s142 = sphi 0, %s126
      %s148 = sphi 0, %s150
      %s151 = sphi 0, %s148
      %s152 = sphi 0, %s151
      %s168 = sphi 0, %s152
      %s174 = sphi 0, %s176
      %s177 = sphi 0, %s174
      %s178 = sphi 0, %s177
      %s194 = sphi 0, %s178
      %s200 = sphi 0, %s202
      %s203 = sphi 0, %s200
      %s204 = sphi 0, %s203
      %s220 = sphi 0, %s204
      %s226 = sphi 0, %s228
      %s229 = sphi 0, %s226
      %s230 = sphi 0, %s229
      %s246 = sphi 0, %s230
      %s252 = sphi 0, %s254
      %s255 = sphi 0, %s252
      %s256 = sphi 0, %s255
      %s272 = sphi 0, %s256
      %s278 = sphi 0, %s280
      %s281 = sphi 0, %s278
      %s282 = sphi 0, %s281
      %s298 = sphi 0, %s282
      %s304 = sphi 0, %s306
      %s307 = sphi 0, %s304
      %s308 = sphi 0, %s307
      %s324 = sphi 0, %s308
      %s330 = sphi 0, %s332
      %s333 = sphi 0, %s330
      %s334 = sphi 0, %s333
      %s350 = sphi 0, %s334
      %s356 = sphi 0, %s358
      %s359 = sphi 0, %s356
      %s360 = sphi 0, %s359
      %s376 = sphi 0, %s360
      %s382 = sphi 0, %s384
      %s385 = sphi 0, %s382
      %s386 = sphi 0, %s385
      %s402 = sphi 0, %s386
    $region4: #{tpu_custom_call.1} parent=1 // loop_header_branch
      %25 = sbr.rel (%p23) target = $region8
    $region5: #{tpu_custom_call.1} parent=1 // loop_body
      %s27 = ssub.s32 %s22, 1
      %s28 = ssub.s32 %s22, 2
      %s35 = sadd.s32 1, %s30
      %p36 = scmp.ge.s32.totalorder %s35, 2
      %s37 = scalar_select %p36, 0, %s35
      %s38 = sadd.s32 1, %s29
      %s39 = scalar_select %p36, %s38, %s29
      %p40 = scmp.ge.s32.totalorder %s39, 2
      %s41 = scalar_select %p40, 0, %s39
      %s42 = ssub.s32 %s29, %s41
      %p43 = scmp.eq.s32.totalorder %s42, 0
      %s45 = sadd.s32 %s44, 1
      %s46 = scalar_select %p43, %s44, %s45
      %p49 = pneg %p43
      %p50 = scmp.eq.s32.totalorder %s22, 3
      %p51 = por %p49, %p50
      %p52 = scmp.ne.s32.totalorder %s44, %s47
      %p53 = scmp.eq.s32.totalorder %s22, 0
      %p54 = por %p52, %p53
      %p55 = scmp.ne.s32.totalorder %s44, %s47
      %p56 = scmp.eq.s32.totalorder %s27, 3
      %p57 = por %p55, %p56
      %p58 = scmp.ne.s32.totalorder %s47, %s48
      %p59 = scmp.eq.s32.totalorder %s27, 0
      %p60 = por %p58, %p59
      %p61 = scmp.ne.s32.totalorder %s47, %s48
      %p62 = scmp.eq.s32.totalorder %s28, 3
      %p63 = por %p61, %p62
      %p65 = scmp.ne.s32.totalorder %s48, %s64
      %p66 = scmp.eq.s32.totalorder %s28, 0
      %p67 = por %p65, %p66
      %s68 = ssub.s32 %s30, %s37
      %p69 = scmp.eq.s32.totalorder %s68, 0
      %s71 = sadd.s32 %s70, 1
      %s72 = scalar_select %p69, %s70, %s71
      %p75 = pneg %p69
      %p76 = scmp.eq.s32.totalorder %s22, 3
      %p77 = por %p75, %p76
      %p78 = scmp.ne.s32.totalorder %s70, %s73
      %p79 = scmp.eq.s32.totalorder %s22, 0
      %p80 = por %p78, %p79
      %p81 = scmp.ne.s32.totalorder %s70, %s73
      %p82 = scmp.eq.s32.totalorder %s27, 3
      %p83 = por %p81, %p82
      %p84 = scmp.ne.s32.totalorder %s73, %s74
      %p85 = scmp.eq.s32.totalorder %s27, 0
      %p86 = por %p84, %p85
      %p87 = scmp.ne.s32.totalorder %s73, %s74
      %p88 = scmp.eq.s32.totalorder %s28, 3
      %p89 = por %p87, %p88
      %p91 = scmp.ne.s32.totalorder %s74, %s90
      %p92 = scmp.eq.s32.totalorder %s28, 0
      %p93 = por %p91, %p92
      %s94 = ssub.s32 %s30, %s37
      %p95 = scmp.eq.s32.totalorder %s94, 0
      %s97 = sadd.s32 %s96, 1
      %s98 = scalar_select %p95, %s96, %s97
      %p101 = pneg %p95
      %p102 = scmp.eq.s32.totalorder %s22, 3
      %p103 = por %p101, %p102
      %p104 = scmp.ne.s32.totalorder %s96, %s99
      %p105 = scmp.eq.s32.totalorder %s22, 0
      %p106 = por %p104, %p105
      %p107 = scmp.ne.s32.totalorder %s96, %s99
      %p108 = scmp.eq.s32.totalorder %s27, 3
      %p109 = por %p107, %p108
      %p110 = scmp.ne.s32.totalorder %s99, %s100
      %p111 = scmp.eq.s32.totalorder %s27, 0
      %p112 = por %p110, %p111
      %p113 = scmp.ne.s32.totalorder %s99, %s100
      %p114 = scmp.eq.s32.totalorder %s28, 3
      %p115 = por %p113, %p114
      %p117 = scmp.ne.s32.totalorder %s100, %s116
      %p118 = scmp.eq.s32.totalorder %s28, 0
      %p119 = por %p117, %p118
      %s120 = ssub.s32 %s30, %s37
      %p121 = scmp.eq.s32.totalorder %s120, 0
      %s123 = sadd.s32 %s122, 1
      %s124 = scalar_select %p121, %s122, %s123
      %p127 = pneg %p121
      %p128 = scmp.eq.s32.totalorder %s22, 3
      %p129 = por %p127, %p128
      %p130 = scmp.ne.s32.totalorder %s122, %s125
      %p131 = scmp.eq.s32.totalorder %s22, 0
      %p132 = por %p130, %p131
      %p133 = scmp.ne.s32.totalorder %s122, %s125
      %p134 = scmp.eq.s32.totalorder %s27, 3
      %p135 = por %p133, %p134
      %p136 = scmp.ne.s32.totalorder %s125, %s126
      %p137 = scmp.eq.s32.totalorder %s27, 0
      %p138 = por %p136, %p137
      %p139 = scmp.ne.s32.totalorder %s125, %s126
      %p140 = scmp.eq.s32.totalorder %s28, 3
      %p141 = por %p139, %p140
      %p143 = scmp.ne.s32.totalorder %s126, %s142
      %p144 = scmp.eq.s32.totalorder %s28, 0
      %p145 = por %p143, %p144
      %s146 = ssub.s32 %s30, %s37
      %p147 = scmp.eq.s32.totalorder %s146, 0
      %s149 = sadd.s32 %s148, 1
      %s150 = scalar_select %p147, %s148, %s149
      %p153 = pneg %p147
      %p154 = scmp.eq.s32.totalorder %s22, 3
      %p155 = por %p153, %p154
      %p156 = scmp.ne.s32.totalorder %s148, %s151
      %p157 = scmp.eq.s32.totalorder %s22, 0
      %p158 = por %p156, %p157
      %p159 = scmp.ne.s32.totalorder %s148, %s151
      %p160 = scmp.eq.s32.totalorder %s27, 3
      %p161 = por %p159, %p160
      %p162 = scmp.ne.s32.totalorder %s151, %s152
      %p163 = scmp.eq.s32.totalorder %s27, 0
      %p164 = por %p162, %p163
      %p165 = scmp.ne.s32.totalorder %s151, %s152
      %p166 = scmp.eq.s32.totalorder %s28, 3
      %p167 = por %p165, %p166
      %p169 = scmp.ne.s32.totalorder %s152, %s168
      %p170 = scmp.eq.s32.totalorder %s28, 0
      %p171 = por %p169, %p170
      %s172 = ssub.s32 %s30, %s37
      %p173 = scmp.eq.s32.totalorder %s172, 0
      %s175 = sadd.s32 %s174, 1
      %s176 = scalar_select %p173, %s174, %s175
      %p179 = pneg %p173
      %p180 = scmp.eq.s32.totalorder %s22, 3
      %p181 = por %p179, %p180
      %p182 = scmp.ne.s32.totalorder %s174, %s177
      %p183 = scmp.eq.s32.totalorder %s22, 0
      %p184 = por %p182, %p183
      %p185 = scmp.ne.s32.totalorder %s174, %s177
      %p186 = scmp.eq.s32.totalorder %s27, 3
      %p187 = por %p185, %p186
      %p188 = scmp.ne.s32.totalorder %s177, %s178
      %p189 = scmp.eq.s32.totalorder %s27, 0
      %p190 = por %p188, %p189
      %p191 = scmp.ne.s32.totalorder %s177, %s178
      %p192 = scmp.eq.s32.totalorder %s28, 3
      %p193 = por %p191, %p192
      %p195 = scmp.ne.s32.totalorder %s178, %s194
      %p196 = scmp.eq.s32.totalorder %s28, 0
      %p197 = por %p195, %p196
      %s198 = ssub.s32 %s30, %s37
      %p199 = scmp.eq.s32.totalorder %s198, 0
      %s201 = sadd.s32 %s200, 1
      %s202 = scalar_select %p199, %s200, %s201
      %p205 = pneg %p199
      %p206 = scmp.eq.s32.totalorder %s22, 3
      %p207 = por %p205, %p206
      %p208 = scmp.ne.s32.totalorder %s200, %s203
      %p209 = scmp.eq.s32.totalorder %s22, 0
      %p210 = por %p208, %p209
      %p211 = scmp.ne.s32.totalorder %s200, %s203
      %p212 = scmp.eq.s32.totalorder %s27, 3
      %p213 = por %p211, %p212
      %p214 = scmp.ne.s32.totalorder %s203, %s204
      %p215 = scmp.eq.s32.totalorder %s27, 0
      %p216 = por %p214, %p215
      %p217 = scmp.ne.s32.totalorder %s203, %s204
      %p218 = scmp.eq.s32.totalorder %s28, 3
      %p219 = por %p217, %p218
      %p221 = scmp.ne.s32.totalorder %s204, %s220
      %p222 = scmp.eq.s32.totalorder %s28, 0
      %p223 = por %p221, %p222
      %s224 = ssub.s32 %s30, %s37
      %p225 = scmp.eq.s32.totalorder %s224, 0
      %s227 = sadd.s32 %s226, 1
      %s228 = scalar_select %p225, %s226, %s227
      %p231 = pneg %p225
      %p232 = scmp.eq.s32.totalorder %s22, 3
      %p233 = por %p231, %p232
      %p234 = scmp.ne.s32.totalorder %s226, %s229
      %p235 = scmp.eq.s32.totalorder %s22, 0
      %p236 = por %p234, %p235
      %p237 = scmp.ne.s32.totalorder %s226, %s229
      %p238 = scmp.eq.s32.totalorder %s27, 3
      %p239 = por %p237, %p238
      %p240 = scmp.ne.s32.totalorder %s229, %s230
      %p241 = scmp.eq.s32.totalorder %s27, 0
      %p242 = por %p240, %p241
      %p243 = scmp.ne.s32.totalorder %s229, %s230
      %p244 = scmp.eq.s32.totalorder %s28, 3
      %p245 = por %p243, %p244
      %p247 = scmp.ne.s32.totalorder %s230, %s246
      %p248 = scmp.eq.s32.totalorder %s28, 0
      %p249 = por %p247, %p248
      %s250 = ssub.s32 %s30, %s37
      %p251 = scmp.eq.s32.totalorder %s250, 0
      %s253 = sadd.s32 %s252, 1
      %s254 = scalar_select %p251, %s252, %s253
      %p257 = pneg %p251
      %p258 = scmp.eq.s32.totalorder %s22, 3
      %p259 = por %p257, %p258
      %p260 = scmp.ne.s32.totalorder %s252, %s255
      %p261 = scmp.eq.s32.totalorder %s22, 0
      %p262 = por %p260, %p261
      %p263 = scmp.ne.s32.totalorder %s252, %s255
      %p264 = scmp.eq.s32.totalorder %s27, 3
      %p265 = por %p263, %p264
      %p266 = scmp.ne.s32.totalorder %s255, %s256
      %p267 = scmp.eq.s32.totalorder %s27, 0
      %p268 = por %p266, %p267
      %p269 = scmp.ne.s32.totalorder %s255, %s256
      %p270 = scmp.eq.s32.totalorder %s28, 3
      %p271 = por %p269, %p270
      %p273 = scmp.ne.s32.totalorder %s256, %s272
      %p274 = scmp.eq.s32.totalorder %s28, 0
      %p275 = por %p273, %p274
      %s276 = ssub.s32 %s30, %s37
      %p277 = scmp.eq.s32.totalorder %s276, 0
      %s279 = sadd.s32 %s278, 1
      %s280 = scalar_select %p277, %s278, %s279
      %p283 = pneg %p277
      %p284 = scmp.eq.s32.totalorder %s22, 3
      %p285 = por %p283, %p284
      %p286 = scmp.ne.s32.totalorder %s278, %s281
      %p287 = scmp.eq.s32.totalorder %s22, 0
      %p288 = por %p286, %p287
      %p289 = scmp.ne.s32.totalorder %s278, %s281
      %p290 = scmp.eq.s32.totalorder %s27, 3
      %p291 = por %p289, %p290
      %p292 = scmp.ne.s32.totalorder %s281, %s282
      %p293 = scmp.eq.s32.totalorder %s27, 0
      %p294 = por %p292, %p293
      %p295 = scmp.ne.s32.totalorder %s281, %s282
      %p296 = scmp.eq.s32.totalorder %s28, 3
      %p297 = por %p295, %p296
      %p299 = scmp.ne.s32.totalorder %s282, %s298
      %p300 = scmp.eq.s32.totalorder %s28, 0
      %p301 = por %p299, %p300
      %s302 = ssub.s32 %s30, %s37
      %p303 = scmp.eq.s32.totalorder %s302, 0
      %s305 = sadd.s32 %s304, 1
      %s306 = scalar_select %p303, %s304, %s305
      %p309 = pneg %p303
      %p310 = scmp.eq.s32.totalorder %s22, 3
      %p311 = por %p309, %p310
      %p312 = scmp.ne.s32.totalorder %s304, %s307
      %p313 = scmp.eq.s32.totalorder %s22, 0
      %p314 = por %p312, %p313
      %p315 = scmp.ne.s32.totalorder %s304, %s307
      %p316 = scmp.eq.s32.totalorder %s27, 3
      %p317 = por %p315, %p316
      %p318 = scmp.ne.s32.totalorder %s307, %s308
      %p319 = scmp.eq.s32.totalorder %s27, 0
      %p320 = por %p318, %p319
      %p321 = scmp.ne.s32.totalorder %s307, %s308
      %p322 = scmp.eq.s32.totalorder %s28, 3
      %p323 = por %p321, %p322
      %p325 = scmp.ne.s32.totalorder %s308, %s324
      %p326 = scmp.eq.s32.totalorder %s28, 0
      %p327 = por %p325, %p326
      %s328 = ssub.s32 %s30, %s37
      %p329 = scmp.eq.s32.totalorder %s328, 0
      %s331 = sadd.s32 %s330, 1
      %s332 = scalar_select %p329, %s330, %s331
      %p335 = pneg %p329
      %p336 = scmp.eq.s32.totalorder %s22, 3
      %p337 = por %p335, %p336
      %p338 = scmp.ne.s32.totalorder %s330, %s333
      %p339 = scmp.eq.s32.totalorder %s22, 0
      %p340 = por %p338, %p339
      %p341 = scmp.ne.s32.totalorder %s330, %s333
      %p342 = scmp.eq.s32.totalorder %s27, 3
      %p343 = por %p341, %p342
      %p344 = scmp.ne.s32.totalorder %s333, %s334
      %p345 = scmp.eq.s32.totalorder %s27, 0
      %p346 = por %p344, %p345
      %p347 = scmp.ne.s32.totalorder %s333, %s334
      %p348 = scmp.eq.s32.totalorder %s28, 3
      %p349 = por %p347, %p348
      %p351 = scmp.ne.s32.totalorder %s334, %s350
      %p352 = scmp.eq.s32.totalorder %s28, 0
      %p353 = por %p351, %p352
      %s354 = ssub.s32 %s30, %s37
      %p355 = scmp.eq.s32.totalorder %s354, 0
      %s357 = sadd.s32 %s356, 1
      %s358 = scalar_select %p355, %s356, %s357
      %p361 = pneg %p355
      %p362 = scmp.eq.s32.totalorder %s22, 3
      %p363 = por %p361, %p362
      %p364 = scmp.ne.s32.totalorder %s356, %s359
      %p365 = scmp.eq.s32.totalorder %s22, 0
      %p366 = por %p364, %p365
      %p367 = scmp.ne.s32.totalorder %s356, %s359
      %p368 = scmp.eq.s32.totalorder %s27, 3
      %p369 = por %p367, %p368
      %p370 = scmp.ne.s32.totalorder %s359, %s360
      %p371 = scmp.eq.s32.totalorder %s27, 0
      %p372 = por %p370, %p371
      %p373 = scmp.ne.s32.totalorder %s359, %s360
      %p374 = scmp.eq.s32.totalorder %s28, 3
      %p375 = por %p373, %p374
      %p377 = scmp.ne.s32.totalorder %s360, %s376
      %p378 = scmp.eq.s32.totalorder %s28, 0
      %p379 = por %p377, %p378
      %s380 = ssub.s32 %s29, %s41
      %p381 = scmp.eq.s32.totalorder %s380, 0
      %s383 = sadd.s32 %s382, 1
      %s384 = scalar_select %p381, %s382, %s383
      %p387 = pneg %p381
      %p388 = scmp.eq.s32.totalorder %s22, 3
      %p389 = por %p387, %p388
      %p390 = scmp.ne.s32.totalorder %s382, %s385
      %p391 = scmp.eq.s32.totalorder %s22, 0
      %p392 = por %p390, %p391
      %p393 = scmp.ne.s32.totalorder %s382, %s385
      %p394 = scmp.eq.s32.totalorder %s27, 3
      %p395 = por %p393, %p394
      %p396 = scmp.ne.s32.totalorder %s385, %s386
      %p397 = scmp.eq.s32.totalorder %s27, 0
      %p398 = por %p396, %p397
      %p399 = scmp.ne.s32.totalorder %s385, %s386
      %p400 = scmp.eq.s32.totalorder %s28, 3
      %p401 = por %p399, %p400
      %p403 = scmp.ne.s32.totalorder %s386, %s402
      %p404 = scmp.eq.s32.totalorder %s28, 0
      %p405 = por %p403, %p404
      %p406 = scmp.le.s32.totalorder 1, %s22
      %p407 = scmp.lt.s32.totalorder %s22, 5
      %p408 = pnand %p406, %p407
      %p409 = pneg %p408
      // Predicated region
      $region9: #{tpu_custom_call.1} parent=5 // pred_check
        _
      $region10: #{tpu_custom_call.1} parent=5 // pred_check_branch
        %411 = sbr.rel (%p408) target = $region12
      $region11: #{tpu_custom_call.1} parent=5 // pred_region
        %s412 = ssub.s32 %s22, 1
      $region12: #{tpu_custom_call.1} parent=5 // pred_fallthru
        _
      %p413 = scmp.lt.s32.totalorder %s22, 4
      // Predicated region
      $region13: #{tpu_custom_call.1} parent=5 // pred_check
        %p414 = pneg %p413
      $region14: #{tpu_custom_call.1} parent=5 // pred_check_branch
        %416 = sbr.rel (%p414) target = $region16
      $region15: #{tpu_custom_call.1} parent=5 // pred_region
        // Predicated region
        $region17: #{tpu_custom_call.1} parent=15 // pred_check
          %p417 = pneg %p54
        $region18: #{tpu_custom_call.1} parent=15 // pred_check_branch
          %419 = sbr.rel (%p417) target = $region20
        $region19: #{tpu_custom_call.1} parent=15 // pred_region
          %p420 = scmp.lt.s32.totalorder %s29, 1
          %s421 = scalar_select %p420, %s29, 1
          %s422 = smul.addr %s421, 8
          %s423 = scalar_lea.vmem %s0, %s422
        $region20: #{tpu_custom_call.1} parent=15 // pred_fallthru
          _
        // Predicated region
        $region21: #{tpu_custom_call.1} parent=15 // pred_check
          %p424 = pneg %p80
        $region22: #{tpu_custom_call.1} parent=15 // pred_check_branch
          %426 = sbr.rel (%p424) target = $region24
        $region23: #{tpu_custom_call.1} parent=15 // pred_region
          %p427 = scmp.lt.s32.totalorder %s30, 1
          %s428 = scalar_select %p427, %s30, 1
          %s429 = scalar_lea.vmem %s1, %s428
        $region24: #{tpu_custom_call.1} parent=15 // pred_fallthru
          _
        // Predicated region
        $region25: #{tpu_custom_call.1} parent=15 // pred_check
          %p430 = pneg %p106
        $region26: #{tpu_custom_call.1} parent=15 // pred_check_branch
          %432 = sbr.rel (%p430) target = $region28
        $region27: #{tpu_custom_call.1} parent=15 // pred_region
          %p433 = scmp.lt.s32.totalorder %s30, 1
          %s434 = scalar_select %p433, %s30, 1
          %s435 = scalar_lea.vmem %s2, %s434
        $region28: #{tpu_custom_call.1} parent=15 // pred_fallthru
          _
        // Predicated region
        $region29: #{tpu_custom_call.1} parent=15 // pred_check
          %p436 = pneg %p132
        $region30: #{tpu_custom_call.1} parent=15 // pred_check_branch
          %438 = sbr.rel (%p436) target = $region32
        $region31: #{tpu_custom_call.1} parent=15 // pred_region
          %p439 = scmp.lt.s32.totalorder %s30, 1
          %s440 = scalar_select %p439, %s30, 1
          %s441 = smul.addr %s440, 4
          %s442 = smul.addr %s441, 4
          %s443 = scalar_lea.vmem %s3, %s442
        $region32: #{tpu_custom_call.1} parent=15 // pred_fallthru
          _
        // Predicated region
        $region33: #{tpu_custom_call.1} parent=15 // pred_check
          %p444 = pneg %p158
        $region34: #{tpu_custom_call.1} parent=15 // pred_check_branch
          %446 = sbr.rel (%p444) target = $region36
        $region35: #{tpu_custom_call.1} parent=15 // pred_region
          %p447 = scmp.lt.s32.totalorder %s30, 1
          %s448 = scalar_select %p447, %s30, 1
          %s449 = scalar_lea.vmem %s4, %s448
        $region36: #{tpu_custom_call.1} parent=15 // pred_fallthru
          _
        // Predicated region
        $region37: #{tpu_custom_call.1} parent=15 // pred_check
          %p450 = pneg %p184
        $region38: #{tpu_custom_call.1} parent=15 // pred_check_branch
          %452 = sbr.rel (%p450) target = $region40
        $region39: #{tpu_custom_call.1} parent=15 // pred_region
          %p453 = scmp.lt.s32.totalorder %s30, 1
          %s454 = scalar_select %p453, %s30, 1
          %s455 = smul.addr %s454, 4
          %s456 = smul.addr %s455, 4
          %s457 = scalar_lea.vmem %s5, %s456
        $region40: #{tpu_custom_call.1} parent=15 // pred_fallthru
          _
        // Predicated region
        $region41: #{tpu_custom_call.1} parent=15 // pred_check
          %p458 = pneg %p210
        $region42: #{tpu_custom_call.1} parent=15 // pred_check_branch
          %460 = sbr.rel (%p458) target = $region44
        $region43: #{tpu_custom_call.1} parent=15 // pred_region
          %p461 = scmp.lt.s32.totalorder %s30, 1
          %s462 = scalar_select %p461, %s30, 1
          %s463 = scalar_lea.vmem %s6, %s462
        $region44: #{tpu_custom_call.1} parent=15 // pred_fallthru
          _
        // Predicated region
        $region45: #{tpu_custom_call.1} parent=15 // pred_check
          %p464 = pneg %p236
        $region46: #{tpu_custom_call.1} parent=15 // pred_check_branch
          %466 = sbr.rel (%p464) target = $region48
        $region47: #{tpu_custom_call.1} parent=15 // pred_region
          %p467 = scmp.lt.s32.totalorder %s30, 1
          %s468 = scalar_select %p467, %s30, 1
          %s469 = scalar_lea.vmem %s7, %s468
        $region48: #{tpu_custom_call.1} parent=15 // pred_fallthru
          _
        // Predicated region
        $region49: #{tpu_custom_call.1} parent=15 // pred_check
          %p470 = pneg %p262
        $region50: #{tpu_custom_call.1} parent=15 // pred_check_branch
          %472 = sbr.rel (%p470) target = $region52
        $region51: #{tpu_custom_call.1} parent=15 // pred_region
          %p473 = scmp.lt.s32.totalorder %s30, 1
          %s474 = scalar_select %p473, %s30, 1
          %s475 = scalar_lea.vmem %s8, %s474
        $region52: #{tpu_custom_call.1} parent=15 // pred_fallthru
          _
        // Predicated region
        $region53: #{tpu_custom_call.1} parent=15 // pred_check
          %p476 = pneg %p288
        $region54: #{tpu_custom_call.1} parent=15 // pred_check_branch
          %478 = sbr.rel (%p476) target = $region56
        $region55: #{tpu_custom_call.1} parent=15 // pred_region
          %p479 = scmp.lt.s32.totalorder %s30, 1
          %s480 = scalar_select %p479, %s30, 1
          %s481 = smul.addr %s480, 4
          %s482 = smul.addr %s481, 4
          %s483 = scalar_lea.vmem %s9, %s482
        $region56: #{tpu_custom_call.1} parent=15 // pred_fallthru
          _
        // Predicated region
        $region57: #{tpu_custom_call.1} parent=15 // pred_check
          %p484 = pneg %p314
        $region58: #{tpu_custom_call.1} parent=15 // pred_check_branch
          %486 = sbr.rel (%p484) target = $region60
        $region59: #{tpu_custom_call.1} parent=15 // pred_region
          %p487 = scmp.lt.s32.totalorder %s30, 1
          %s488 = scalar_select %p487, %s30, 1
          %s489 = scalar_lea.vmem %s10, %s488
        $region60: #{tpu_custom_call.1} parent=15 // pred_fallthru
          _
        // Predicated region
        $region61: #{tpu_custom_call.1} parent=15 // pred_check
          %p490 = pneg %p340
        $region62: #{tpu_custom_call.1} parent=15 // pred_check_branch
          %492 = sbr.rel (%p490) target = $region64
        $region63: #{tpu_custom_call.1} parent=15 // pred_region
          %p493 = scmp.lt.s32.totalorder %s30, 1
          %s494 = scalar_select %p493, %s30, 1
          %s495 = smul.addr %s494, 16
          %s496 = smul.addr %s495, 4
          %s497 = scalar_lea.vmem %s11, %s496
        $region64: #{tpu_custom_call.1} parent=15 // pred_fallthru
          _
        // Predicated region
        $region65: #{tpu_custom_call.1} parent=15 // pred_check
          %p498 = pneg %p366
        $region66: #{tpu_custom_call.1} parent=15 // pred_check_branch
          %500 = sbr.rel (%p498) target = $region68
        $region67: #{tpu_custom_call.1} parent=15 // pred_region
          %p501 = scmp.lt.s32.totalorder %s30, 1
          %s502 = scalar_select %p501, %s30, 1
          %s503 = scalar_lea.vmem %s12, %s502
        $region68: #{tpu_custom_call.1} parent=15 // pred_fallthru
          _
      $region16: #{tpu_custom_call.1} parent=5 // pred_fallthru
        _
      %p504 = scmp.le.s32.totalorder 1, %s22
      %p505 = scmp.lt.s32.totalorder %s22, 5
      %p506 = pnand %p504, %p505
      %p507 = pneg %p506
      // Predicated region
      $region69: #{tpu_custom_call.1} parent=5 // pred_check
        _
      $region70: #{tpu_custom_call.1} parent=5 // pred_check_branch
        %509 = sbr.rel (%p506) target = $region72
      $region71: #{tpu_custom_call.1} parent=5 // pred_region
        %s510 = ssub.s32 %s22, 1
        %p511 = scmp.lt.s32.totalorder %s31, 1
        %s512 = scalar_select %p511, %s31, 1
        %s513 = smul.addr %s512, 8
        %s514 = scalar_lea.vmem %s0, %s513
        %p515 = pneg %p60
        %p516 = pneg %p57
        %p517 = scmp.lt.s32.totalorder %s32, 1
        %s518 = scalar_select %p517, %s32, 1
        %s519 = scalar_lea.vmem %s1, %s518
        %p520 = pneg %p86
        %p521 = pneg %p83
        %p522 = scmp.lt.s32.totalorder %s32, 1
        %s523 = scalar_select %p522, %s32, 1
        %s524 = scalar_lea.vmem %s2, %s523
        %p525 = pneg %p112
        %p526 = pneg %p109
        %p527 = scmp.lt.s32.totalorder %s32, 1
        %s528 = scalar_select %p527, %s32, 1
        %s529 = smul.addr %s528, 4
        %s530 = smul.addr %s529, 4
        %s531 = scalar_lea.vmem %s3, %s530
        %p532 = pneg %p138
        %p533 = pneg %p135
        %p534 = scmp.lt.s32.totalorder %s32, 1
        %s535 = scalar_select %p534, %s32, 1
        %s536 = scalar_lea.vmem %s4, %s535
        %p537 = pneg %p164
        %p538 = pneg %p161
        %p539 = scmp.lt.s32.totalorder %s32, 1
        %s540 = scalar_select %p539, %s32, 1
        %s541 = smul.addr %s540, 4
        %s542 = smul.addr %s541, 4
        %s543 = scalar_lea.vmem %s5, %s542
        %p544 = pneg %p190
        %p545 = pneg %p187
        %p546 = scmp.lt.s32.totalorder %s32, 1
        %s547 = scalar_select %p546, %s32, 1
        %s548 = scalar_lea.vmem %s6, %s547
        %p549 = pneg %p216
        %p550 = pneg %p213
        %p551 = scmp.lt.s32.totalorder %s32, 1
        %s552 = scalar_select %p551, %s32, 1
        %s553 = scalar_lea.vmem %s7, %s552
        %p554 = pneg %p242
        %p555 = pneg %p239
        %p556 = scmp.lt.s32.totalorder %s32, 1
        %s557 = scalar_select %p556, %s32, 1
        %s558 = scalar_lea.vmem %s8, %s557
        %p559 = pneg %p268
        %p560 = pneg %p265
        %p561 = scmp.lt.s32.totalorder %s32, 1
        %s562 = scalar_select %p561, %s32, 1
        %s563 = smul.addr %s562, 4
        %s564 = smul.addr %s563, 4
        %s565 = scalar_lea.vmem %s9, %s564
        %p566 = pneg %p294
        %p567 = pneg %p291
        %p568 = scmp.lt.s32.totalorder %s32, 1
        %s569 = scalar_select %p568, %s32, 1
        %s570 = scalar_lea.vmem %s10, %s569
        %p571 = pneg %p320
        %p572 = pneg %p317
        %p573 = scmp.lt.s32.totalorder %s32, 1
        %s574 = scalar_select %p573, %s32, 1
        %s575 = smul.addr %s574, 16
        %s576 = smul.addr %s575, 4
        %s577 = scalar_lea.vmem %s11, %s576
        %p578 = pneg %p346
        %p579 = pneg %p343
        %p580 = scmp.lt.s32.totalorder %s32, 1
        %s581 = scalar_select %p580, %s32, 1
        %s582 = scalar_lea.vmem %s12, %s581
        %p583 = pneg %p372
        %p584 = pneg %p369
        %p585 = pneg %p398
        %p586 = pneg %p395
        %s587 = sand.u32 %s385, 1
        %s588 = scalar_lea.sflag [#allocation4], %s587
        %s589 = sand.u32 %s385, 1
        %s590 = smul.addr %s589, 8
        %s591 = scalar_lea.vmem [#allocation3], %s590
        %p592 = scmp.lt.s32.totalorder %s31, 1
        %s593 = scalar_select %p592, %s31, 1
        %s594 = smul.addr %s593, 8
        %s595 = scalar_lea.vmem %s0, %s594
        %p596 = scmp.lt.s32.totalorder %s32, 1
        %s597 = scalar_select %p596, %s32, 1
        %s598 = scalar_lea.vmem %s1, %s597
        %p599 = scmp.lt.s32.totalorder %s32, 1
        %s600 = scalar_select %p599, %s32, 1
        %s601 = scalar_lea.vmem %s2, %s600
        %p602 = scmp.lt.s32.totalorder %s32, 1
        %s603 = scalar_select %p602, %s32, 1
        %s604 = smul.addr %s603, 4
        %s605 = smul.addr %s604, 4
        %s606 = scalar_lea.vmem %s3, %s605
        %p607 = scmp.lt.s32.totalorder %s32, 1
        %s608 = scalar_select %p607, %s32, 1
        %s609 = scalar_lea.vmem %s4, %s608
        %p610 = scmp.lt.s32.totalorder %s32, 1
        %s611 = scalar_select %p610, %s32, 1
        %s612 = smul.addr %s611, 4
        %s613 = smul.addr %s612, 4
        %s614 = scalar_lea.vmem %s5, %s613
        %p615 = scmp.lt.s32.totalorder %s32, 1
        %s616 = scalar_select %p615, %s32, 1
        %s617 = scalar_lea.vmem %s6, %s616
        %p618 = scmp.lt.s32.totalorder %s32, 1
        %s619 = scalar_select %p618, %s32, 1
        %s620 = scalar_lea.vmem %s7, %s619
        %p621 = scmp.lt.s32.totalorder %s32, 1
        %s622 = scalar_select %p621, %s32, 1
        %s623 = scalar_lea.vmem %s8, %s622
        %p624 = scmp.lt.s32.totalorder %s32, 1
        %s625 = scalar_select %p624, %s32, 1
        %s626 = smul.addr %s625, 4
        %s627 = smul.addr %s626, 4
        %s628 = scalar_lea.vmem %s9, %s627
        %p629 = scmp.lt.s32.totalorder %s32, 1
        %s630 = scalar_select %p629, %s32, 1
        %s631 = scalar_lea.vmem %s10, %s630
        %p632 = scmp.lt.s32.totalorder %s32, 1
        %s633 = scalar_select %p632, %s32, 1
        %s634 = smul.addr %s633, 16
        %s635 = smul.addr %s634, 4
        %s636 = scalar_lea.vmem %s11, %s635
        %p637 = scmp.lt.s32.totalorder %s32, 1
        %s638 = scalar_select %p637, %s32, 1
        %s639 = scalar_lea.vmem %s12, %s638
        %p641 = scmp.eq.s32.totalorder %s32, 0
        // Predicated region
        $region73: #{tpu_custom_call.1} parent=71 // pred_check
          %p642 = pneg %p641
        $region74: #{tpu_custom_call.1} parent=71 // pred_check_branch
          %644 = sbr.rel (%p642) target = $region76
        $region75: #{tpu_custom_call.1} parent=71 // pred_region
          %v645 = vld [vmem:[%s595] sm:$0xff]
          %vm646 = vcmask 261120
          %647 = vst.msk [vmem:[#allocation2] sm:$0xff] %vm646, %v645
        $region76: #{tpu_custom_call.1} parent=71 // pred_fallthru
          _
        %v648 = vld [vmem:[#allocation2] sm:$0xff]
        %v649 = vld [vmem:[%s598] sm:$0x1]
        %v650 = vld [vmem:[%s601] sm:$0x1]
        %vm651 = vcmask 261120
        %v652 = vsel %vm651, %v648, 0.0
        %653 = vadd.xlane.f32.xlu0 %v652
        %v654 = vpop.xlane.xlu0 %653
        %v655 = vrcp.pop 32.0
        %v656 = vmul.f32 %v654, %v655
        %v657 = vsub.f32 %v648, %v656
        %v658 = vmul.f32 %v657, %v657
        %v659 = vsel %vm651, %v658, 0.0
        %660 = vadd.xlane.f32.xlu0 %v659
        %v661 = vpop.xlane.xlu0 %660
        %v662 = vmul.f32 %v661, %v655
        %v663 = vadd.f32 %v662, 1e-05
        %v664 = vrsqrt.pop %v663
        %v665 = vmul.f32 %v657, %v664
        %v667 = vlaneseq
        %v668 = vshrl.u32 %v667, 7
        %v669 = vsub.s32 0, %v668
        %v670 = vrot.slane %v649, %v669
        %v672 = vmul.f32 %v665, %v670
        %v674 = vlaneseq
        %v675 = vshrl.u32 %v674, 7
        %v676 = vsub.s32 0, %v675
        %v677 = vrot.slane %v650, %v676
        %v679 = vadd.f32 %v672, %v677
        %v680 = vpack.c.bf16 %v679, %v679
        %v681 = vld [vmem:[%s606] sm:$0xf]
        %v682 = vld [vmem:[%s606 + $0x4] sm:$0xf]
        %v683 = vld [vmem:[%s606 + $0x8] sm:$0xf]
        %v684 = vld [vmem:[%s606 + $0xc] sm:$0xf]
        %v685 = vld [vmem:[%s609] sm:$0x1]
        %v687 = vlaneseq
        %v688 = vshrl.u32 %v687, 7
        %v689 = vsub.s32 0, %v688
        %v690 = vrot.slane %v685, %v689
        %v696 = vunpack.c.l.b16 %v681
        %v697 = vunpack.c.l.b16 %v682
        %v698 = vunpack.c.l.b16 %v683
        %v699 = vunpack.c.l.b16 %v684
        %v700 = vpack.c.b16 %v697, %v696
        %v701 = vpack.c.b16 %v699, %v698
        %v705 = vsel %vm651, %v680, 0
        %707 = vmatprep.subr.bf16.mxu0 0
        %708 = vmatpush1.bf16.msra.mxu0 %v700
        %709 = vmatprep.subr.bf16.mxu0 0
        %710 = vmatpush1.bf16.msra.mxu0 %v701
        %711 = vmatprep.subr.bf16.mxu0 0
        %712 = vmatpush1.bf16.msra.mxu0 0
        %713 = vmatprep.subr.bf16.mxu0 0
        %714 = vmatpush1.bf16.msra.mxu0 0
        %715 = vmatprep.subr.bf16.mxu0 0
        %716 = vmatpush1.bf16.msra.mxu0 0
        %717 = vmatprep.subr.bf16.mxu0 0
        %718 = vmatpush1.bf16.msra.mxu0 0
        %719 = vmatprep.subr.bf16.mxu0 0
        %720 = vmatpush1.bf16.msra.mxu0 0
        %721 = vmatprep.subr.bf16.mxu0 0
        %722 = vmatpush1.bf16.msra.mxu0 0
        %723 = vmatprep.subr.bf16.mxu0 0
        %724 = vmatpush1.bf16.msra.mxu0 0
        %725 = vmatprep.subr.bf16.mxu0 0
        %726 = vmatpush1.bf16.msra.mxu0 0
        %727 = vmatprep.subr.bf16.mxu0 0
        %728 = vmatpush1.bf16.msra.mxu0 0
        %729 = vmatprep.subr.bf16.mxu0 0
        %730 = vmatpush1.bf16.msra.mxu0 0
        %731 = vmatprep.subr.bf16.mxu0 0
        %732 = vmatpush1.bf16.msra.mxu0 0
        %733 = vmatprep.subr.bf16.mxu0 0
        %734 = vmatpush1.bf16.msra.mxu0 0
        %735 = vmatprep.subr.bf16.mxu0 0
        %736 = vmatpush1.bf16.msra.mxu0 0
        %737 = vmatprep.subr.bf16.mxu0 0
        %738 = vmatpush1.bf16.msra.mxu0 0
        %739 = vmatprep.mubr.bf16.mxu0 0
        %740 = vmatmul.mubr.bf16.gmra.mrb[0].mxu0 %v705
        %v741 = vpop.f32.mrb[0].mxu0
        %v742 = vadd.f32 %v690, %v741
        %v743 = vpop.f32.mrb[0].mxu0
        %v744 = vpop.f32.mrb[0].mxu0
        %v745 = vpop.f32.mrb[0].mxu0
        %746 = vdwg.mxu0
        %v747 = vpack.c.bf16 %v742, %v742
        %v748 = vlaneseq
        %v749 = vshrl.u32 %v748, 7
        %v750 = vlaneseq
        %v751 = vand.u32 %v750, 127
        %vm752 = vcmp.ge.s32.totalorder %v749, %v751
        %v753 = vld [vmem:[%s614] sm:$0xf]
        %v754 = vld [vmem:[%s614 + $0x4] sm:$0xf]
        %v755 = vld [vmem:[%s614 + $0x8] sm:$0xf]
        %v756 = vld [vmem:[%s614 + $0xc] sm:$0xf]
        %758 = vrot.lane.b32.xlu0 %v747, 96
        %v759 = vpop.permute.xlu0 %758
        %vm760 = vcmask 64512
        %v762 = vsel %vm760, %v747, 0
        %v765 = vsel %vm760, %v759, 0
        %767 = vmatprep.subr.bf16.mxu0 0
        %768 = vmatpush1.bf16.xpose.msra.mxu0 %v765
        %769 = vmatprep.subr.bf16.mxu0 0
        %770 = vmatpush1.bf16.xpose.msra.mxu0 0
        %771 = vmatprep.subr.bf16.mxu0 0
        %772 = vmatpush1.bf16.xpose.msra.mxu0 0
        %773 = vmatprep.subr.bf16.mxu0 0
        %774 = vmatpush1.bf16.xpose.msra.mxu0 0
        %775 = vmatprep.subr.bf16.mxu0 0
        %776 = vmatpush1.bf16.xpose.msra.mxu0 0
        %777 = vmatprep.subr.bf16.mxu0 0
        %778 = vmatpush1.bf16.xpose.msra.mxu0 0
        %779 = vmatprep.subr.bf16.mxu0 0
        %780 = vmatpush1.bf16.xpose.msra.mxu0 0
        %781 = vmatprep.subr.bf16.mxu0 0
        %782 = vmatpush1.bf16.xpose.msra.mxu0 0
        %783 = vmatprep.subr.bf16.mxu0 0
        %784 = vmatpush1.bf16.xpose.msra.mxu0 0
        %785 = vmatprep.subr.bf16.mxu0 0
        %786 = vmatpush1.bf16.xpose.msra.mxu0 0
        %787 = vmatprep.subr.bf16.mxu0 0
        %788 = vmatpush1.bf16.xpose.msra.mxu0 0
        %789 = vmatprep.subr.bf16.mxu0 0
        %790 = vmatpush1.bf16.xpose.msra.mxu0 0
        %791 = vmatprep.subr.bf16.mxu0 0
        %792 = vmatpush1.bf16.xpose.msra.mxu0 0
        %793 = vmatprep.subr.bf16.mxu0 0
        %794 = vmatpush1.bf16.xpose.msra.mxu0 0
        %795 = vmatprep.subr.bf16.mxu0 0
        %796 = vmatpush1.bf16.xpose.msra.mxu0 0
        %797 = vmatprep.subr.bf16.mxu0 0
        %798 = vmatpush1.bf16.xpose.msra.mxu0 0
        %799 = vmatprep.mubr.bf16.mxu0 0
        %800 = vmatmul.mubr.bf16.gmra.mrb[0].mxu0 %v762
        %v801 = vpop.f32.mrb[0].mxu0
        %v802 = vadd.f32 0.0, %v801
        %v803 = vpop.f32.mrb[0].mxu0
        %v804 = vpop.f32.mrb[0].mxu0
        %v805 = vpop.f32.mrb[0].mxu0
        %806 = vdwg.mxu0
        %v807 = vmul.f32 %v802, 0.35355338
        %v808 = vsel %vm752, %v807, -1e+10
        %v809 = vsel %vm760, %v808, -inf
        %810 = vmax.xlane.f32.xlu0 %v809
        %v811 = vpop.xlane.xlu0 %810
        %v812 = vsub.f32 %v808, %v811
        %v813 = vmul.f32 %v812, 1.442695
        %v814 = vpow.pop %v813
        %v815 = vsel %vm760, %v814, 0.0
        %816 = vadd.xlane.f32.xlu0 %v815
        %v817 = vpop.xlane.xlu0 %816
        %v818 = vrcp.pop %v817
        %v819 = vmul.f32 %v814, %v818
        %v820 = vpack.c.bf16 %v819, %v819
        %821 = vrot.lane.b32.xlu0 %v747, 64
        %v822 = vpop.permute.xlu0 %821
        %v824 = vsel %vm760, %v820, 0
        %vm826 = vcmask 1043456
        %v828 = vsel %vm826, %v822, 0
        %830 = vmatprep.subr.bf16.mxu0 0
        %831 = vmatpush1.bf16.msra.mxu0 %v828
        %832 = vmatprep.subr.bf16.mxu0 0
        %833 = vmatpush1.bf16.msra.mxu0 0
        %834 = vmatprep.subr.bf16.mxu0 0
        %835 = vmatpush1.bf16.msra.mxu0 0
        %836 = vmatprep.subr.bf16.mxu0 0
        %837 = vmatpush1.bf16.msra.mxu0 0
        %838 = vmatprep.subr.bf16.mxu0 0
        %839 = vmatpush1.bf16.msra.mxu0 0
        %840 = vmatprep.subr.bf16.mxu0 0
        %841 = vmatpush1.bf16.msra.mxu0 0
        %842 = vmatprep.subr.bf16.mxu0 0
        %843 = vmatpush1.bf16.msra.mxu0 0
        %844 = vmatprep.subr.bf16.mxu0 0
        %845 = vmatpush1.bf16.msra.mxu0 0
        %846 = vmatprep.subr.bf16.mxu0 0
        %847 = vmatpush1.bf16.msra.mxu0 0
        %848 = vmatprep.subr.bf16.mxu0 0
        %849 = vmatpush1.bf16.msra.mxu0 0
        %850 = vmatprep.subr.bf16.mxu0 0
        %851 = vmatpush1.bf16.msra.mxu0 0
        %852 = vmatprep.subr.bf16.mxu0 0
        %853 = vmatpush1.bf16.msra.mxu0 0
        %854 = vmatprep.subr.bf16.mxu0 0
        %855 = vmatpush1.bf16.msra.mxu0 0
        %856 = vmatprep.subr.bf16.mxu0 0
        %857 = vmatpush1.bf16.msra.mxu0 0
        %858 = vmatprep.subr.bf16.mxu0 0
        %859 = vmatpush1.bf16.msra.mxu0 0
        %860 = vmatprep.subr.bf16.mxu0 0
        %861 = vmatpush1.bf16.msra.mxu0 0
        %862 = vmatprep.mubr.bf16.mxu0 0
        %863 = vmatmul.mubr.bf16.gmra.mrb[0].mxu0 %v824
        %v864 = vpop.f32.mrb[0].mxu0
        %v865 = vadd.f32 0.0, %v864
        %v866 = vpop.f32.mrb[0].mxu0
        %v867 = vpop.f32.mrb[0].mxu0
        %v868 = vpop.f32.mrb[0].mxu0
        %869 = vdwg.mxu0
        %v870 = vpack.c.bf16 %v865, %v865
        %871 = vrot.lane.b32.xlu0 %v747, 120
        %v872 = vpop.permute.xlu0 %871
        %873 = vrot.lane.b32.xlu0 %v747, 88
        %v874 = vpop.permute.xlu0 %873
        %v876 = vsel %vm760, %v872, 0
        %v879 = vsel %vm760, %v874, 0
        %881 = vmatprep.subr.bf16.mxu0 0
        %882 = vmatpush1.bf16.xpose.msra.mxu0 %v879
        %883 = vmatprep.subr.bf16.mxu0 0
        %884 = vmatpush1.bf16.xpose.msra.mxu0 0
        %885 = vmatprep.subr.bf16.mxu0 0
        %886 = vmatpush1.bf16.xpose.msra.mxu0 0
        %887 = vmatprep.subr.bf16.mxu0 0
        %888 = vmatpush1.bf16.xpose.msra.mxu0 0
        %889 = vmatprep.subr.bf16.mxu0 0
        %890 = vmatpush1.bf16.xpose.msra.mxu0 0
        %891 = vmatprep.subr.bf16.mxu0 0
        %892 = vmatpush1.bf16.xpose.msra.mxu0 0
        %893 = vmatprep.subr.bf16.mxu0 0
        %894 = vmatpush1.bf16.xpose.msra.mxu0 0
        %895 = vmatprep.subr.bf16.mxu0 0
        %896 = vmatpush1.bf16.xpose.msra.mxu0 0
        %897 = vmatprep.subr.bf16.mxu0 0
        %898 = vmatpush1.bf16.xpose.msra.mxu0 0
        %899 = vmatprep.subr.bf16.mxu0 0
        %900 = vmatpush1.bf16.xpose.msra.mxu0 0
        %901 = vmatprep.subr.bf16.mxu0 0
        %902 = vmatpush1.bf16.xpose.msra.mxu0 0
        %903 = vmatprep.subr.bf16.mxu0 0
        %904 = vmatpush1.bf16.xpose.msra.mxu0 0
        %905 = vmatprep.subr.bf16.mxu0 0
        %906 = vmatpush1.bf16.xpose.msra.mxu0 0
        %907 = vmatprep.subr.bf16.mxu0 0
        %908 = vmatpush1.bf16.xpose.msra.mxu0 0
        %909 = vmatprep.subr.bf16.mxu0 0
        %910 = vmatpush1.bf16.xpose.msra.mxu0 0
        %911 = vmatprep.subr.bf16.mxu0 0
        %912 = vmatpush1.bf16.xpose.msra.mxu0 0
        %913 = vmatprep.mubr.bf16.mxu0 0
        %914 = vmatmul.mubr.bf16.gmra.mrb[0].mxu0 %v876
        %v915 = vpop.f32.mrb[0].mxu0
        %v916 = vadd.f32 0.0, %v915
        %v917 = vpop.f32.mrb[0].mxu0
        %v918 = vpop.f32.mrb[0].mxu0
        %v919 = vpop.f32.mrb[0].mxu0
        %920 = vdwg.mxu0
        %v921 = vmul.f32 %v916, 0.35355338
        %v922 = vsel %vm752, %v921, -1e+10
        %v923 = vsel %vm760, %v922, -inf
        %924 = vmax.xlane.f32.xlu0 %v923
        %v925 = vpop.xlane.xlu0 %924
        %v926 = vsub.f32 %v922, %v925
        %v927 = vmul.f32 %v926, 1.442695
        %v928 = vpow.pop %v927
        %v929 = vsel %vm760, %v928, 0.0
        %930 = vadd.xlane.f32.xlu0 %v929
        %v931 = vpop.xlane.xlu0 %930
        %v932 = vrcp.pop %v931
        %v933 = vmul.f32 %v928, %v932
        %v934 = vpack.c.bf16 %v933, %v933
        %935 = vrot.lane.b32.xlu0 %v747, 56
        %v936 = vpop.permute.xlu0 %935
        %v938 = vsel %vm760, %v934, 0
        %v941 = vsel %vm826, %v936, 0
        %943 = vmatprep.subr.bf16.mxu0 0
        %944 = vmatpush1.bf16.msra.mxu0 %v941
        %945 = vmatprep.subr.bf16.mxu0 0
        %946 = vmatpush1.bf16.msra.mxu0 0
        %947 = vmatprep.subr.bf16.mxu0 0
        %948 = vmatpush1.bf16.msra.mxu0 0
        %949 = vmatprep.subr.bf16.mxu0 0
        %950 = vmatpush1.bf16.msra.mxu0 0
        %951 = vmatprep.subr.bf16.mxu0 0
        %952 = vmatpush1.bf16.msra.mxu0 0
        %953 = vmatprep.subr.bf16.mxu0 0
        %954 = vmatpush1.bf16.msra.mxu0 0
        %955 = vmatprep.subr.bf16.mxu0 0
        %956 = vmatpush1.bf16.msra.mxu0 0
        %957 = vmatprep.subr.bf16.mxu0 0
        %958 = vmatpush1.bf16.msra.mxu0 0
        %959 = vmatprep.subr.bf16.mxu0 0
        %960 = vmatpush1.bf16.msra.mxu0 0
        %961 = vmatprep.subr.bf16.mxu0 0
        %962 = vmatpush1.bf16.msra.mxu0 0
        %963 = vmatprep.subr.bf16.mxu0 0
        %964 = vmatpush1.bf16.msra.mxu0 0
        %965 = vmatprep.subr.bf16.mxu0 0
        %966 = vmatpush1.bf16.msra.mxu0 0
        %967 = vmatprep.subr.bf16.mxu0 0
        %968 = vmatpush1.bf16.msra.mxu0 0
        %969 = vmatprep.subr.bf16.mxu0 0
        %970 = vmatpush1.bf16.msra.mxu0 0
        %971 = vmatprep.subr.bf16.mxu0 0
        %972 = vmatpush1.bf16.msra.mxu0 0
        %973 = vmatprep.subr.bf16.mxu0 0
        %974 = vmatpush1.bf16.msra.mxu0 0
        %975 = vmatprep.mubr.bf16.mxu0 0
        %976 = vmatmul.mubr.bf16.gmra.mrb[0].mxu0 %v938
        %v977 = vpop.f32.mrb[0].mxu0
        %v978 = vadd.f32 0.0, %v977
        %v979 = vpop.f32.mrb[0].mxu0
        %v980 = vpop.f32.mrb[0].mxu0
        %v981 = vpop.f32.mrb[0].mxu0
        %982 = vdwg.mxu0
        %v983 = vpack.c.bf16 %v978, %v978
        %v985 = vsel %vm760, %v983, 0
        %v988 = vsel %vm826, %v754, 0
        %990 = vmatprep.subr.bf16.mxu0 0
        %991 = vmatpush1.bf16.msra.mxu0 %v988
        %992 = vmatprep.subr.bf16.mxu0 0
        %993 = vmatpush1.bf16.msra.mxu0 0
        %994 = vmatprep.subr.bf16.mxu0 0
        %995 = vmatpush1.bf16.msra.mxu0 0
        %996 = vmatprep.subr.bf16.mxu0 0
        %997 = vmatpush1.bf16.msra.mxu0 0
        %998 = vmatprep.subr.bf16.mxu0 0
        %999 = vmatpush1.bf16.msra.mxu0 0
        %1000 = vmatprep.subr.bf16.mxu0 0
        %1001 = vmatpush1.bf16.msra.mxu0 0
        %1002 = vmatprep.subr.bf16.mxu0 0
        %1003 = vmatpush1.bf16.msra.mxu0 0
        %1004 = vmatprep.subr.bf16.mxu0 0
        %1005 = vmatpush1.bf16.msra.mxu0 0
        %1006 = vmatprep.subr.bf16.mxu0 0
        %1007 = vmatpush1.bf16.msra.mxu0 0
        %1008 = vmatprep.subr.bf16.mxu0 0
        %1009 = vmatpush1.bf16.msra.mxu0 0
        %1010 = vmatprep.subr.bf16.mxu0 0
        %1011 = vmatpush1.bf16.msra.mxu0 0
        %1012 = vmatprep.subr.bf16.mxu0 0
        %1013 = vmatpush1.bf16.msra.mxu0 0
        %1014 = vmatprep.subr.bf16.mxu0 0
        %1015 = vmatpush1.bf16.msra.mxu0 0
        %1016 = vmatprep.subr.bf16.mxu0 0
        %1017 = vmatpush1.bf16.msra.mxu0 0
        %1018 = vmatprep.subr.bf16.mxu0 0
        %1019 = vmatpush1.bf16.msra.mxu0 0
        %1020 = vmatprep.subr.bf16.mxu0 0
        %1021 = vmatpush1.bf16.msra.mxu0 0
        %1022 = vmatprep.mubr.bf16.mxu0 0
        %1023 = vmatmul.mubr.bf16.gmra.mrb[0].mxu0 %v985
        %v1024 = vpop.f32.mrb[0].mxu0
        %v1025 = vadd.f32 0.0, %v1024
        %v1026 = vpop.f32.mrb[0].mxu0
        %v1027 = vpop.f32.mrb[0].mxu0
        %v1028 = vpop.f32.mrb[0].mxu0
        %1029 = vdwg.mxu0
        %v1031 = vsel %vm760, %v870, 0
        %v1034 = vsel %vm826, %v753, 0
        %1036 = vmatprep.subr.bf16.mxu0 0
        %1037 = vmatpush1.bf16.msra.mxu0 %v1034
        %1038 = vmatprep.subr.bf16.mxu0 0
        %1039 = vmatpush1.bf16.msra.mxu0 0
        %1040 = vmatprep.subr.bf16.mxu0 0
        %1041 = vmatpush1.bf16.msra.mxu0 0
        %1042 = vmatprep.subr.bf16.mxu0 0
        %1043 = vmatpush1.bf16.msra.mxu0 0
        %1044 = vmatprep.subr.bf16.mxu0 0
        %1045 = vmatpush1.bf16.msra.mxu0 0
        %1046 = vmatprep.subr.bf16.mxu0 0
        %1047 = vmatpush1.bf16.msra.mxu0 0
        %1048 = vmatprep.subr.bf16.mxu0 0
        %1049 = vmatpush1.bf16.msra.mxu0 0
        %1050 = vmatprep.subr.bf16.mxu0 0
        %1051 = vmatpush1.bf16.msra.mxu0 0
        %1052 = vmatprep.subr.bf16.mxu0 0
        %1053 = vmatpush1.bf16.msra.mxu0 0
        %1054 = vmatprep.subr.bf16.mxu0 0
        %1055 = vmatpush1.bf16.msra.mxu0 0
        %1056 = vmatprep.subr.bf16.mxu0 0
        %1057 = vmatpush1.bf16.msra.mxu0 0
        %1058 = vmatprep.subr.bf16.mxu0 0
        %1059 = vmatpush1.bf16.msra.mxu0 0
        %1060 = vmatprep.subr.bf16.mxu0 0
        %1061 = vmatpush1.bf16.msra.mxu0 0
        %1062 = vmatprep.subr.bf16.mxu0 0
        %1063 = vmatpush1.bf16.msra.mxu0 0
        %1064 = vmatprep.subr.bf16.mxu0 0
        %1065 = vmatpush1.bf16.msra.mxu0 0
        %1066 = vmatprep.subr.bf16.mxu0 0
        %1067 = vmatpush1.bf16.msra.mxu0 0
        %1068 = vmatprep.mubr.bf16.mxu0 0
        %1069 = vmatmul.mubr.bf16.gmra.mrb[0].mxu0 %v1031
        %v1070 = vpop.f32.mrb[0].mxu0
        %v1071 = vadd.f32 %v1025, %v1070
        %v1072 = vpop.f32.mrb[0].mxu0
        %v1073 = vpop.f32.mrb[0].mxu0
        %v1074 = vpop.f32.mrb[0].mxu0
        %1075 = vdwg.mxu0
        %1076 = vrot.lane.b32.xlu0 %v747, 112
        %v1077 = vpop.permute.xlu0 %1076
        %1078 = vrot.lane.b32.xlu0 %v747, 80
        %v1079 = vpop.permute.xlu0 %1078
        %v1081 = vsel %vm760, %v1077, 0
        %v1084 = vsel %vm760, %v1079, 0
        %1086 = vmatprep.subr.bf16.mxu0 0
        %1087 = vmatpush1.bf16.xpose.msra.mxu0 %v1084
        %1088 = vmatprep.subr.bf16.mxu0 0
        %1089 = vmatpush1.bf16.xpose.msra.mxu0 0
        %1090 = vmatprep.subr.bf16.mxu0 0
        %1091 = vmatpush1.bf16.xpose.msra.mxu0 0
        %1092 = vmatprep.subr.bf16.mxu0 0
        %1093 = vmatpush1.bf16.xpose.msra.mxu0 0
        %1094 = vmatprep.subr.bf16.mxu0 0
        %1095 = vmatpush1.bf16.xpose.msra.mxu0 0
        %1096 = vmatprep.subr.bf16.mxu0 0
        %1097 = vmatpush1.bf16.xpose.msra.mxu0 0
        %1098 = vmatprep.subr.bf16.mxu0 0
        %1099 = vmatpush1.bf16.xpose.msra.mxu0 0
        %1100 = vmatprep.subr.bf16.mxu0 0
        %1101 = vmatpush1.bf16.xpose.msra.mxu0 0
        %1102 = vmatprep.subr.bf16.mxu0 0
        %1103 = vmatpush1.bf16.xpose.msra.mxu0 0
        %1104 = vmatprep.subr.bf16.mxu0 0
        %1105 = vmatpush1.bf16.xpose.msra.mxu0 0
        %1106 = vmatprep.subr.bf16.mxu0 0
        %1107 = vmatpush1.bf16.xpose.msra.mxu0 0
        %1108 = vmatprep.subr.bf16.mxu0 0
        %1109 = vmatpush1.bf16.xpose.msra.mxu0 0
        %1110 = vmatprep.subr.bf16.mxu0 0
        %1111 = vmatpush1.bf16.xpose.msra.mxu0 0
        %1112 = vmatprep.subr.bf16.mxu0 0
        %1113 = vmatpush1.bf16.xpose.msra.mxu0 0
        %1114 = vmatprep.subr.bf16.mxu0 0
        %1115 = vmatpush1.bf16.xpose.msra.mxu0 0
        %1116 = vmatprep.subr.bf16.mxu0 0
        %1117 = vmatpush1.bf16.xpose.msra.mxu0 0
        %1118 = vmatprep.mubr.bf16.mxu0 0
        %1119 = vmatmul.mubr.bf16.gmra.mrb[0].mxu0 %v1081
        %v1120 = vpop.f32.mrb[0].mxu0
        %v1121 = vadd.f32 0.0, %v1120
        %v1122 = vpop.f32.mrb[0].mxu0
        %v1123 = vpop.f32.mrb[0].mxu0
        %v1124 = vpop.f32.mrb[0].mxu0
        %1125 = vdwg.mxu0
        %v1126 = vmul.f32 %v1121, 0.35355338
        %v1127 = vsel %vm752, %v1126, -1e+10
        %v1128 = vsel %vm760, %v1127, -inf
        %1129 = vmax.xlane.f32.xlu0 %v1128
        %v1130 = vpop.xlane.xlu0 %1129
        %v1131 = vsub.f32 %v1127, %v1130
        %v1132 = vmul.f32 %v1131, 1.442695
        %v1133 = vpow.pop %v1132
        %v1134 = vsel %vm760, %v1133, 0.0
        %1135 = vadd.xlane.f32.xlu0 %v1134
        %v1136 = vpop.xlane.xlu0 %1135
        %v1137 = vrcp.pop %v1136
        %v1138 = vmul.f32 %v1133, %v1137
        %v1139 = vpack.c.bf16 %v1138, %v1138
        %1140 = vrot.lane.b32.xlu0 %v747, 48
        %v1141 = vpop.permute.xlu0 %1140
        %v1143 = vsel %vm760, %v1139, 0
        %v1146 = vsel %vm826, %v1141, 0
        %1148 = vmatprep.subr.bf16.mxu0 0
        %1149 = vmatpush1.bf16.msra.mxu0 %v1146
        %1150 = vmatprep.subr.bf16.mxu0 0
        %1151 = vmatpush1.bf16.msra.mxu0 0
        %1152 = vmatprep.subr.bf16.mxu0 0
        %1153 = vmatpush1.bf16.msra.mxu0 0
        %1154 = vmatprep.subr.bf16.mxu0 0
        %1155 = vmatpush1.bf16.msra.mxu0 0
        %1156 = vmatprep.subr.bf16.mxu0 0
        %1157 = vmatpush1.bf16.msra.mxu0 0
        %1158 = vmatprep.subr.bf16.mxu0 0
        %1159 = vmatpush1.bf16.msra.mxu0 0
        %1160 = vmatprep.subr.bf16.mxu0 0
        %1161 = vmatpush1.bf16.msra.mxu0 0
        %1162 = vmatprep.subr.bf16.mxu0 0
        %1163 = vmatpush1.bf16.msra.mxu0 0
        %1164 = vmatprep.subr.bf16.mxu0 0
        %1165 = vmatpush1.bf16.msra.mxu0 0
        %1166 = vmatprep.subr.bf16.mxu0 0
        %1167 = vmatpush1.bf16.msra.mxu0 0
        %1168 = vmatprep.subr.bf16.mxu0 0
        %1169 = vmatpush1.bf16.msra.mxu0 0
        %1170 = vmatprep.subr.bf16.mxu0 0
        %1171 = vmatpush1.bf16.msra.mxu0 0
        %1172 = vmatprep.subr.bf16.mxu0 0
        %1173 = vmatpush1.bf16.msra.mxu0 0
        %1174 = vmatprep.subr.bf16.mxu0 0
        %1175 = vmatpush1.bf16.msra.mxu0 0
        %1176 = vmatprep.subr.bf16.mxu0 0
        %1177 = vmatpush1.bf16.msra.mxu0 0
        %1178 = vmatprep.subr.bf16.mxu0 0
        %1179 = vmatpush1.bf16.msra.mxu0 0
        %1180 = vmatprep.mubr.bf16.mxu0 0
        %1181 = vmatmul.mubr.bf16.gmra.mrb[0].mxu0 %v1143
        %v1182 = vpop.f32.mrb[0].mxu0
        %v1183 = vadd.f32 0.0, %v1182
        %v1184 = vpop.f32.mrb[0].mxu0
        %v1185 = vpop.f32.mrb[0].mxu0
        %v1186 = vpop.f32.mrb[0].mxu0
        %1187 = vdwg.mxu0
        %v1188 = vpack.c.bf16 %v1183, %v1183
        %v1190 = vsel %vm760, %v1188, 0
        %v1193 = vsel %vm826, %v755, 0
        %1195 = vmatprep.subr.bf16.mxu0 0
        %1196 = vmatpush1.bf16.msra.mxu0 %v1193
        %1197 = vmatprep.subr.bf16.mxu0 0
        %1198 = vmatpush1.bf16.msra.mxu0 0
        %1199 = vmatprep.subr.bf16.mxu0 0
        %1200 = vmatpush1.bf16.msra.mxu0 0
        %1201 = vmatprep.subr.bf16.mxu0 0
        %1202 = vmatpush1.bf16.msra.mxu0 0
        %1203 = vmatprep.subr.bf16.mxu0 0
        %1204 = vmatpush1.bf16.msra.mxu0 0
        %1205 = vmatprep.subr.bf16.mxu0 0
        %1206 = vmatpush1.bf16.msra.mxu0 0
        %1207 = vmatprep.subr.bf16.mxu0 0
        %1208 = vmatpush1.bf16.msra.mxu0 0
        %1209 = vmatprep.subr.bf16.mxu0 0
        %1210 = vmatpush1.bf16.msra.mxu0 0
        %1211 = vmatprep.subr.bf16.mxu0 0
        %1212 = vmatpush1.bf16.msra.mxu0 0
        %1213 = vmatprep.subr.bf16.mxu0 0
        %1214 = vmatpush1.bf16.msra.mxu0 0
        %1215 = vmatprep.subr.bf16.mxu0 0
        %1216 = vmatpush1.bf16.msra.mxu0 0
        %1217 = vmatprep.subr.bf16.mxu0 0
        %1218 = vmatpush1.bf16.msra.mxu0 0
        %1219 = vmatprep.subr.bf16.mxu0 0
        %1220 = vmatpush1.bf16.msra.mxu0 0
        %1221 = vmatprep.subr.bf16.mxu0 0
        %1222 = vmatpush1.bf16.msra.mxu0 0
        %1223 = vmatprep.subr.bf16.mxu0 0
        %1224 = vmatpush1.bf16.msra.mxu0 0
        %1225 = vmatprep.subr.bf16.mxu0 0
        %1226 = vmatpush1.bf16.msra.mxu0 0
        %1227 = vmatprep.mubr.bf16.mxu0 0
        %1228 = vmatmul.mubr.bf16.gmra.mrb[0].mxu0 %v1190
        %v1229 = vpop.f32.mrb[0].mxu0
        %v1230 = vadd.f32 0.0, %v1229
        %v1231 = vpop.f32.mrb[0].mxu0
        %v1232 = vpop.f32.mrb[0].mxu0
        %v1233 = vpop.f32.mrb[0].mxu0
        %1234 = vdwg.mxu0
        %v1235 = vadd.f32 %v1071, %v1230
        %1236 = vrot.lane.b32.xlu0 %v747, 104
        %v1237 = vpop.permute.xlu0 %1236
        %1238 = vrot.lane.b32.xlu0 %v747, 72
        %v1239 = vpop.permute.xlu0 %1238
        %v1241 = vsel %vm760, %v1237, 0
        %v1244 = vsel %vm760, %v1239, 0
        %1246 = vmatprep.subr.bf16.mxu0 0
        %1247 = vmatpush1.bf16.xpose.msra.mxu0 %v1244
        %1248 = vmatprep.subr.bf16.mxu0 0
        %1249 = vmatpush1.bf16.xpose.msra.mxu0 0
        %1250 = vmatprep.subr.bf16.mxu0 0
        %1251 = vmatpush1.bf16.xpose.msra.mxu0 0
        %1252 = vmatprep.subr.bf16.mxu0 0
        %1253 = vmatpush1.bf16.xpose.msra.mxu0 0
        %1254 = vmatprep.subr.bf16.mxu0 0
        %1255 = vmatpush1.bf16.xpose.msra.mxu0 0
        %1256 = vmatprep.subr.bf16.mxu0 0
        %1257 = vmatpush1.bf16.xpose.msra.mxu0 0
        %1258 = vmatprep.subr.bf16.mxu0 0
        %1259 = vmatpush1.bf16.xpose.msra.mxu0 0
        %1260 = vmatprep.subr.bf16.mxu0 0
        %1261 = vmatpush1.bf16.xpose.msra.mxu0 0
        %1262 = vmatprep.subr.bf16.mxu0 0
        %1263 = vmatpush1.bf16.xpose.msra.mxu0 0
        %1264 = vmatprep.subr.bf16.mxu0 0
        %1265 = vmatpush1.bf16.xpose.msra.mxu0 0
        %1266 = vmatprep.subr.bf16.mxu0 0
        %1267 = vmatpush1.bf16.xpose.msra.mxu0 0
        %1268 = vmatprep.subr.bf16.mxu0 0
        %1269 = vmatpush1.bf16.xpose.msra.mxu0 0
        %1270 = vmatprep.subr.bf16.mxu0 0
        %1271 = vmatpush1.bf16.xpose.msra.mxu0 0
        %1272 = vmatprep.subr.bf16.mxu0 0
        %1273 = vmatpush1.bf16.xpose.msra.mxu0 0
        %1274 = vmatprep.subr.bf16.mxu0 0
        %1275 = vmatpush1.bf16.xpose.msra.mxu0 0
        %1276 = vmatprep.subr.bf16.mxu0 0
        %1277 = vmatpush1.bf16.xpose.msra.mxu0 0
        %1278 = vmatprep.mubr.bf16.mxu0 0
        %1279 = vmatmul.mubr.bf16.gmra.mrb[0].mxu0 %v1241
        %v1280 = vpop.f32.mrb[0].mxu0
        %v1281 = vadd.f32 0.0, %v1280
        %v1282 = vpop.f32.mrb[0].mxu0
        %v1283 = vpop.f32.mrb[0].mxu0
        %v1284 = vpop.f32.mrb[0].mxu0
        %1285 = vdwg.mxu0
        %v1286 = vmul.f32 %v1281, 0.35355338
        %v1287 = vsel %vm752, %v1286, -1e+10
        %v1288 = vsel %vm760, %v1287, -inf
        %1289 = vmax.xlane.f32.xlu0 %v1288
        %v1290 = vpop.xlane.xlu0 %1289
        %v1291 = vsub.f32 %v1287, %v1290
        %v1292 = vmul.f32 %v1291, 1.442695
        %v1293 = vpow.pop %v1292
        %v1294 = vsel %vm760, %v1293, 0.0
        %1295 = vadd.xlane.f32.xlu0 %v1294
        %v1296 = vpop.xlane.xlu0 %1295
        %v1297 = vrcp.pop %v1296
        %v1298 = vmul.f32 %v1293, %v1297
        %v1299 = vpack.c.bf16 %v1298, %v1298
        %1300 = vrot.lane.b32.xlu0 %v747, 40
        %v1301 = vpop.permute.xlu0 %1300
        %v1303 = vsel %vm760, %v1299, 0
        %v1306 = vsel %vm826, %v1301, 0
        %1308 = vmatprep.subr.bf16.mxu0 0
        %1309 = vmatpush1.bf16.msra.mxu0 %v1306
        %1310 = vmatprep.subr.bf16.mxu0 0
        %1311 = vmatpush1.bf16.msra.mxu0 0
        %1312 = vmatprep.subr.bf16.mxu0 0
        %1313 = vmatpush1.bf16.msra.mxu0 0
        %1314 = vmatprep.subr.bf16.mxu0 0
        %1315 = vmatpush1.bf16.msra.mxu0 0
        %1316 = vmatprep.subr.bf16.mxu0 0
        %1317 = vmatpush1.bf16.msra.mxu0 0
        %1318 = vmatprep.subr.bf16.mxu0 0
        %1319 = vmatpush1.bf16.msra.mxu0 0
        %1320 = vmatprep.subr.bf16.mxu0 0
        %1321 = vmatpush1.bf16.msra.mxu0 0
        %1322 = vmatprep.subr.bf16.mxu0 0
        %1323 = vmatpush1.bf16.msra.mxu0 0
        %1324 = vmatprep.subr.bf16.mxu0 0
        %1325 = vmatpush1.bf16.msra.mxu0 0
        %1326 = vmatprep.subr.bf16.mxu0 0
        %1327 = vmatpush1.bf16.msra.mxu0 0
        %1328 = vmatprep.subr.bf16.mxu0 0
        %1329 = vmatpush1.bf16.msra.mxu0 0
        %1330 = vmatprep.subr.bf16.mxu0 0
        %1331 = vmatpush1.bf16.msra.mxu0 0
        %1332 = vmatprep.subr.bf16.mxu0 0
        %1333 = vmatpush1.bf16.msra.mxu0 0
        %1334 = vmatprep.subr.bf16.mxu0 0
        %1335 = vmatpush1.bf16.msra.mxu0 0
        %1336 = vmatprep.subr.bf16.mxu0 0
        %1337 = vmatpush1.bf16.msra.mxu0 0
        %1338 = vmatprep.subr.bf16.mxu0 0
        %1339 = vmatpush1.bf16.msra.mxu0 0
        %1340 = vmatprep.mubr.bf16.mxu0 0
        %1341 = vmatmul.mubr.bf16.gmra.mrb[0].mxu0 %v1303
        %v1342 = vpop.f32.mrb[0].mxu0
        %v1343 = vadd.f32 0.0, %v1342
        %v1344 = vpop.f32.mrb[0].mxu0
        %v1345 = vpop.f32.mrb[0].mxu0
        %v1346 = vpop.f32.mrb[0].mxu0
        %1347 = vdwg.mxu0
        %v1348 = vpack.c.bf16 %v1343, %v1343
        %v1350 = vsel %vm760, %v1348, 0
        %v1353 = vsel %vm826, %v756, 0
        %1355 = vmatprep.subr.bf16.mxu0 0
        %1356 = vmatpush1.bf16.msra.mxu0 %v1353
        %1357 = vmatprep.subr.bf16.mxu0 0
        %1358 = vmatpush1.bf16.msra.mxu0 0
        %1359 = vmatprep.subr.bf16.mxu0 0
        %1360 = vmatpush1.bf16.msra.mxu0 0
        %1361 = vmatprep.subr.bf16.mxu0 0
        %1362 = vmatpush1.bf16.msra.mxu0 0
        %1363 = vmatprep.subr.bf16.mxu0 0
        %1364 = vmatpush1.bf16.msra.mxu0 0
        %1365 = vmatprep.subr.bf16.mxu0 0
        %1366 = vmatpush1.bf16.msra.mxu0 0
        %1367 = vmatprep.subr.bf16.mxu0 0
        %1368 = vmatpush1.bf16.msra.mxu0 0
        %1369 = vmatprep.subr.bf16.mxu0 0
        %1370 = vmatpush1.bf16.msra.mxu0 0
        %1371 = vmatprep.subr.bf16.mxu0 0
        %1372 = vmatpush1.bf16.msra.mxu0 0
        %1373 = vmatprep.subr.bf16.mxu0 0
        %1374 = vmatpush1.bf16.msra.mxu0 0
        %1375 = vmatprep.subr.bf16.mxu0 0
        %1376 = vmatpush1.bf16.msra.mxu0 0
        %1377 = vmatprep.subr.bf16.mxu0 0
        %1378 = vmatpush1.bf16.msra.mxu0 0
        %1379 = vmatprep.subr.bf16.mxu0 0
        %1380 = vmatpush1.bf16.msra.mxu0 0
        %1381 = vmatprep.subr.bf16.mxu0 0
        %1382 = vmatpush1.bf16.msra.mxu0 0
        %1383 = vmatprep.subr.bf16.mxu0 0
        %1384 = vmatpush1.bf16.msra.mxu0 0
        %1385 = vmatprep.subr.bf16.mxu0 0
        %1386 = vmatpush1.bf16.msra.mxu0 0
        %1387 = vmatprep.mubr.bf16.mxu0 0
        %1388 = vmatmul.mubr.bf16.gmra.mrb[0].mxu0 %v1350
        %v1389 = vpop.f32.mrb[0].mxu0
        %v1390 = vadd.f32 0.0, %v1389
        %v1391 = vpop.f32.mrb[0].mxu0
        %v1392 = vpop.f32.mrb[0].mxu0
        %v1393 = vpop.f32.mrb[0].mxu0
        %1394 = vdwg.mxu0
        %v1395 = vadd.f32 %v1235, %v1390
        %v1396 = vadd.f32 %v648, %v1395
        %v1397 = vld [vmem:[%s617] sm:$0x1]
        %v1399 = vlaneseq
        %v1400 = vshrl.u32 %v1399, 7
        %v1401 = vsub.s32 0, %v1400
        %v1402 = vrot.slane %v1397, %v1401
        %v1404 = vadd.f32 %v1396, %v1402
        %v1405 = vld [vmem:[%s620] sm:$0x1]
        %v1406 = vld [vmem:[%s623] sm:$0x1]
        %v1407 = vsel %vm651, %v1404, 0.0
        %1408 = vadd.xlane.f32.xlu0 %v1407
        %v1409 = vpop.xlane.xlu0 %1408
        %v1410 = vmul.f32 %v1409, %v655
        %v1411 = vsub.f32 %v1404, %v1410
        %v1412 = vmul.f32 %v1411, %v1411
        %v1413 = vsel %vm651, %v1412, 0.0
        %1414 = vadd.xlane.f32.xlu0 %v1413
        %v1415 = vpop.xlane.xlu0 %1414
        %v1416 = vmul.f32 %v1415, %v655
        %v1417 = vadd.f32 %v1416, 1e-05
        %v1418 = vrsqrt.pop %v1417
        %v1419 = vmul.f32 %v1411, %v1418
        %v1421 = vlaneseq
        %v1422 = vshrl.u32 %v1421, 7
        %v1423 = vsub.s32 0, %v1422
        %v1424 = vrot.slane %v1405, %v1423
        %v1426 = vmul.f32 %v1419, %v1424
        %v1428 = vlaneseq
        %v1429 = vshrl.u32 %v1428, 7
        %v1430 = vsub.s32 0, %v1429
        %v1431 = vrot.slane %v1406, %v1430
        %v1433 = vadd.f32 %v1426, %v1431
        %v1434 = vpack.c.bf16 %v1433, %v1433
        %v1435 = vld [vmem:[%s628] sm:$0xf]
        %v1436 = vld [vmem:[%s628 + $0x4] sm:$0xf]
        %v1437 = vld [vmem:[%s628 + $0x8] sm:$0xf]
        %v1438 = vld [vmem:[%s628 + $0xc] sm:$0xf]
        %v1439 = vld [vmem:[%s631] sm:$0x1]
        %v1441 = vlaneseq
        %v1442 = vshrl.u32 %v1441, 7
        %v1443 = vsub.s32 0, %v1442
        %v1444 = vrot.slane %v1439, %v1443
        %v1450 = vunpack.c.l.b16 %v1435
        %v1451 = vunpack.c.l.b16 %v1436
        %v1452 = vunpack.c.l.b16 %v1437
        %v1453 = vunpack.c.l.b16 %v1438
        %v1454 = vpack.c.b16 %v1451, %v1450
        %v1455 = vpack.c.b16 %v1453, %v1452
        %v1459 = vsel %vm651, %v1434, 0
        %1461 = vmatprep.subr.bf16.mxu0 0
        %1462 = vmatpush1.bf16.msra.mxu0 %v1454
        %1463 = vmatprep.subr.bf16.mxu0 0
        %1464 = vmatpush1.bf16.msra.mxu0 %v1455
        %1465 = vmatprep.subr.bf16.mxu0 0
        %1466 = vmatpush1.bf16.msra.mxu0 0
        %1467 = vmatprep.subr.bf16.mxu0 0
        %1468 = vmatpush1.bf16.msra.mxu0 0
        %1469 = vmatprep.subr.bf16.mxu0 0
        %1470 = vmatpush1.bf16.msra.mxu0 0
        %1471 = vmatprep.subr.bf16.mxu0 0
        %1472 = vmatpush1.bf16.msra.mxu0 0
        %1473 = vmatprep.subr.bf16.mxu0 0
        %1474 = vmatpush1.bf16.msra.mxu0 0
        %1475 = vmatprep.subr.bf16.mxu0 0
        %1476 = vmatpush1.bf16.msra.mxu0 0
        %1477 = vmatprep.subr.bf16.mxu0 0
        %1478 = vmatpush1.bf16.msra.mxu0 0
        %1479 = vmatprep.subr.bf16.mxu0 0
        %1480 = vmatpush1.bf16.msra.mxu0 0
        %1481 = vmatprep.subr.bf16.mxu0 0
        %1482 = vmatpush1.bf16.msra.mxu0 0
        %1483 = vmatprep.subr.bf16.mxu0 0
        %1484 = vmatpush1.bf16.msra.mxu0 0
        %1485 = vmatprep.subr.bf16.mxu0 0
        %1486 = vmatpush1.bf16.msra.mxu0 0
        %1487 = vmatprep.subr.bf16.mxu0 0
        %1488 = vmatpush1.bf16.msra.mxu0 0
        %1489 = vmatprep.subr.bf16.mxu0 0
        %1490 = vmatpush1.bf16.msra.mxu0 0
        %1491 = vmatprep.subr.bf16.mxu0 0
        %1492 = vmatpush1.bf16.msra.mxu0 0
        %1493 = vmatprep.mubr.bf16.mxu0 0
        %1494 = vmatmul.mubr.bf16.gmra.mrb[0].mxu0 %v1459
        %v1495 = vpop.f32.mrb[0].mxu0
        %v1496 = vadd.f32 %v1444, %v1495
        %v1497 = vpop.f32.mrb[0].mxu0
        %v1498 = vpop.f32.mrb[0].mxu0
        %v1499 = vpop.f32.mrb[0].mxu0
        %1500 = vdwg.mxu0
        %v1501 = vmul.f32 %v1496, 0.5
        %v1502 = vmul.f32 %v1496, 0.044715
        %v1503 = vmul.f32 %v1502, %v1496
        %v1504 = vmul.f32 %v1503, %v1496
        %v1505 = vadd.f32 %v1496, %v1504
        %v1506 = vmul.f32 %v1505, 0.7978846
        %v1507 = vtanh.pop %v1506
        %v1508 = vadd.f32 %v1507, 1.0
        %v1509 = vmul.f32 %v1501, %v1508
        %v1510 = vpack.c.bf16 %v1509, %v1509
        %v1511 = vld [vmem:[%s636] sm:$0xf]
        %v1512 = vld [vmem:[%s636 + $0x4] sm:$0xf]
        %v1513 = vld [vmem:[%s636 + $0x8] sm:$0xf]
        %v1514 = vld [vmem:[%s636 + $0xc] sm:$0xf]
        %v1515 = vld [vmem:[%s636 + $0x10] sm:$0xf]
        %v1516 = vld [vmem:[%s636 + $0x14] sm:$0xf]
        %v1517 = vld [vmem:[%s636 + $0x18] sm:$0xf]
        %v1518 = vld [vmem:[%s636 + $0x1c] sm:$0xf]
        %v1519 = vld [vmem:[%s636 + $0x20] sm:$0xf]
        %v1520 = vld [vmem:[%s636 + $0x24] sm:$0xf]
        %v1521 = vld [vmem:[%s636 + $0x28] sm:$0xf]
        %v1522 = vld [vmem:[%s636 + $0x2c] sm:$0xf]
        %v1523 = vld [vmem:[%s636 + $0x30] sm:$0xf]
        %v1524 = vld [vmem:[%s636 + $0x34] sm:$0xf]
        %v1525 = vld [vmem:[%s636 + $0x38] sm:$0xf]
        %v1526 = vld [vmem:[%s636 + $0x3c] sm:$0xf]
        %v1527 = vld [vmem:[%s639] sm:$0x1]
        %v1529 = vlaneseq
        %v1530 = vshrl.u32 %v1529, 7
        %v1531 = vsub.s32 0, %v1530
        %v1532 = vrot.slane %v1527, %v1531
        %v1550 = vunpack.c.l.b16 %v1511
        %v1551 = vunpack.c.l.b16 %v1512
        %v1552 = vunpack.c.l.b16 %v1513
        %v1553 = vunpack.c.l.b16 %v1514
        %v1554 = vunpack.c.l.b16 %v1515
        %v1555 = vunpack.c.l.b16 %v1516
        %v1556 = vunpack.c.l.b16 %v1517
        %v1557 = vunpack.c.l.b16 %v1518
        %v1558 = vunpack.c.l.b16 %v1519
        %v1559 = vunpack.c.l.b16 %v1520
        %v1560 = vunpack.c.l.b16 %v1521
        %v1561 = vunpack.c.l.b16 %v1522
        %v1562 = vunpack.c.l.b16 %v1523
        %v1563 = vunpack.c.l.b16 %v1524
        %v1564 = vunpack.c.l.b16 %v1525
        %v1565 = vunpack.c.l.b16 %v1526
        %v1566 = vpack.c.b16 %v1551, %v1550
        %v1567 = vpack.c.b16 %v1553, %v1552
        %v1568 = vpack.c.b16 %v1555, %v1554
        %v1569 = vpack.c.b16 %v1557, %v1556
        %v1570 = vpack.c.b16 %v1559, %v1558
        %v1571 = vpack.c.b16 %v1561, %v1560
        %v1572 = vpack.c.b16 %v1563, %v1562
        %v1573 = vpack.c.b16 %v1565, %v1564
        %1582 = vmatprep.subr.bf16.mxu0 0
        %1583 = vmatpush1.bf16.msra.mxu0 %v1566
        %1584 = vmatprep.subr.bf16.mxu0 0
        %1585 = vmatpush1.bf16.msra.mxu0 %v1567
        %1586 = vmatprep.subr.bf16.mxu0 0
        %1587 = vmatpush1.bf16.msra.mxu0 %v1568
        %1588 = vmatprep.subr.bf16.mxu0 0
        %1589 = vmatpush1.bf16.msra.mxu0 %v1569
        %1590 = vmatprep.subr.bf16.mxu0 0
        %1591 = vmatpush1.bf16.msra.mxu0 %v1570
        %1592 = vmatprep.subr.bf16.mxu0 0
        %1593 = vmatpush1.bf16.msra.mxu0 %v1571
        %1594 = vmatprep.subr.bf16.mxu0 0
        %1595 = vmatpush1.bf16.msra.mxu0 %v1572
        %1596 = vmatprep.subr.bf16.mxu0 0
        %1597 = vmatpush1.bf16.msra.mxu0 %v1573
        %1598 = vmatprep.subr.bf16.mxu0 0
        %1599 = vmatpush1.bf16.msra.mxu0 0
        %1600 = vmatprep.subr.bf16.mxu0 0
        %1601 = vmatpush1.bf16.msra.mxu0 0
        %1602 = vmatprep.subr.bf16.mxu0 0
        %1603 = vmatpush1.bf16.msra.mxu0 0
        %1604 = vmatprep.subr.bf16.mxu0 0
        %1605 = vmatpush1.bf16.msra.mxu0 0
        %1606 = vmatprep.subr.bf16.mxu0 0
        %1607 = vmatpush1.bf16.msra.mxu0 0
        %1608 = vmatprep.subr.bf16.mxu0 0
        %1609 = vmatpush1.bf16.msra.mxu0 0
        %1610 = vmatprep.subr.bf16.mxu0 0
        %1611 = vmatpush1.bf16.msra.mxu0 0
        %1612 = vmatprep.subr.bf16.mxu0 0
        %1613 = vmatpush1.bf16.msra.mxu0 0
        %1614 = vmatprep.mubr.bf16.mxu0 0
        %1615 = vmatmul.mubr.bf16.gmra.mrb[0].mxu0 %v1510
        %v1616 = vpop.f32.mrb[0].mxu0
        %v1617 = vadd.f32 %v1532, %v1616
        %v1618 = vpop.f32.mrb[0].mxu0
        %v1619 = vpop.f32.mrb[0].mxu0
        %v1620 = vpop.f32.mrb[0].mxu0
        %1621 = vdwg.mxu0
        %v1622 = vadd.f32 %v1404, %v1617
        %1623 = vst.msk [vmem:[#allocation2] sm:$0xff] %vm651, %v1622
        %p1624 = scmp.eq.s32.totalorder %s32, 1
        // Predicated region
        $region77: #{tpu_custom_call.1} parent=71 // pred_check
          %p1625 = pneg %p1624
        $region78: #{tpu_custom_call.1} parent=71 // pred_check_branch
          %1627 = sbr.rel (%p1625) target = $region80
        $region79: #{tpu_custom_call.1} parent=71 // pred_region
          %v1628 = vld [vmem:[#allocation2] sm:$0xff]
          %1629 = vst.msk [vmem:[%s591] sm:$0xff] %vm651, %v1628
        $region80: #{tpu_custom_call.1} parent=71 // pred_fallthru
          _
        %s1630 = sand.u32 %s385, 1
        %s1631 = scalar_lea.sflag [#allocation4], %s1630
        %s1632 = sand.u32 %s385, 1
        %s1633 = smul.addr %s1632, 8
        %s1634 = scalar_lea.vmem [#allocation3], %s1633
        // Predicated region
        $region81: #{tpu_custom_call.1} parent=71 // pred_check
          %p1635 = pneg %p395
        $region82: #{tpu_custom_call.1} parent=71 // pred_check_branch
          %1637 = sbr.rel (%p1635) target = $region84
        $region83: #{tpu_custom_call.1} parent=71 // pred_region
          %s1639 = ssub.s32 128, 128
          %1640 = vsyncadd %s1631, %s1639
          %s1641 = smul.addr %s31, 128
          %s1642 = scalar_lea.hbm %s13, %s1641
          %s1644 = sshll.u32 %s1634, 4
          %s1645 = int_to_ptr.vmem [resolvable:$true] %s1644
          %1647 = dma.vmem_to_hbm [thread:$0]  %s1645, 128, %s1642, %s1631
        $region84: #{tpu_custom_call.1} parent=71 // pred_fallthru
          _
      $region72: #{tpu_custom_call.1} parent=5 // pred_fallthru
        _
      %p1648 = scmp.le.s32.totalorder 2, %s22
      // Predicated region
      $region85: #{tpu_custom_call.1} parent=5 // pred_check
        %p1649 = pneg %p1648
      $region86: #{tpu_custom_call.1} parent=5 // pred_check_branch
        %1651 = sbr.rel (%p1649) target = $region88
      $region87: #{tpu_custom_call.1} parent=5 // pred_region
        %s1652 = ssub.s32 %s22, 2
        // Predicated region
        $region89: #{tpu_custom_call.1} parent=87 // pred_check
          %p1653 = pneg %p401
        $region90: #{tpu_custom_call.1} parent=87 // pred_check_branch
          %1655 = sbr.rel (%p1653) target = $region92
        $region91: #{tpu_custom_call.1} parent=87 // pred_region
          %s1656 = sand.u32 %s386, 1
          %s1657 = scalar_lea.sflag [#allocation4], %s1656
          %s1658 = sand.u32 %s386, 1
          %s1659 = smul.addr %s1658, 8
          %s1660 = scalar_lea.vmem [#allocation3], %s1659
          %1661 = dma.done %s1657, 128
        $region92: #{tpu_custom_call.1} parent=87 // pred_fallthru
          _
      $region88: #{tpu_custom_call.1} parent=5 // pred_fallthru
        _
    $region6: #{tpu_custom_call.1} parent=1 // loop_footer
      %s26 = sadd.s32 1, %s22
    $region7: #{tpu_custom_call.1} parent=1 // loop_footer_branch
      %21 = sbr.rel target = $region3
    $region8: #{tpu_custom_call.1} parent=1 // loop_exit
      _
    %1662 = vsyncpa [#allocation4], 1
    %s1663 = scalar_lea.sflag [#allocation4], 1
    %1664 = vsyncpa %s1663, 1

</llo_original>
